<compile_context>
chip_gen: v5e
topology: v5e:2x2
jax: 0.10.0
libtpu: 0.0.40
codegen_flags: <defaults>
</compile_context>

<pallas_src>
import math

import jax
import jax.numpy as jnp
from jax.experimental import pallas as pl
from jax.experimental.pallas import tpu as pltpu

EPS = 1e-5
LANE = 128
BN_WIDTH = 8   # packed BN / affine operand width (lane columns)


# ----------------------------------------------------------------------------
# In-kernel helpers (only definitely-lowerable ops: f32 lane roll, whole-ref
# loads/stores, lane-masked select + reduce -- no minor-dim concat/slice).
# ----------------------------------------------------------------------------
def _lane_select(packed, ci, k):
    """Column k of `packed` (rows, W) as a (rows, 1) array."""
    return jnp.sum(jnp.where(ci == k, packed, 0.0), axis=1, keepdims=True)


def _lane_pack(ci, cols):
    """Pack a list of (rows, 1) arrays into one (rows, W) array (W = ci.shape[1])."""
    acc = jnp.zeros(ci.shape, jnp.float32)
    for k, c in enumerate(cols):
        acc = jnp.where(ci == k, c, acc)
    return acc


def _make_taps(tile_cols, not_first, not_last):
    def taps(z32):
        """Left/right neighbour columns of z32 (f32); sample edges zeroed; bf16."""
        zl = jnp.where(not_first, pltpu.roll(z32, 1, 1), 0.0)
        zr = jnp.where(not_last, pltpu.roll(z32, tile_cols - 1, 1), 0.0)
        return zl.astype(jnp.bfloat16), zr.astype(jnp.bfloat16)
    return taps


# ----------------------------------------------------------------------------
# Call A: BatchNorm batch statistics -> packed per-channel scale/shift
# ----------------------------------------------------------------------------
def make_stats_kernel(*, n, l, l_pad, b_tile, planes, use_projection, needs_mask):
    tile_cols = b_tile * l_pad
    inv_count = 1.0 / float(n * l)            # BN divisor: real columns only

    def kernel(*refs):
        if use_projection:
            (x_ref, wl1_ref, wc1_ref, wr1_ref, wl2_ref, wc2_ref, wr2_ref,
             bn_ref, aff_ref,
             s1_sum, s1_sq, s2_sum, s2_sq, ssc_sum, ssc_sq) = refs
        else:
            (x_ref, wl1_ref, wc1_ref, wr1_ref, wl2_ref, wc2_ref, wr2_ref,
             bn_ref, aff_ref,
             s1_sum, s1_sq, s2_sum, s2_sq) = refs
            ssc_sum = ssc_sq = None

        ph = pl.program_id(0)     # 0: bn1 (+shortcut-bn) stats, 1: bn2 stats
        t = pl.program_id(1)      # column tile (b_tile whole samples)

        col = jax.lax.broadcasted_iota(jnp.int32, (1, tile_cols), 1)
        pos = col % l_pad
        not_first = pos != 0               # has a left neighbour in its sample
        not_last = pos != (l - 1)          # has a right neighbour in its sample
        taps = _make_taps(tile_cols, not_first, not_last)
        if needs_mask:
            sample = t * b_tile + col // l_pad
            valid = (pos < l) & (sample < n)   # real (non-padding) columns
        else:
            valid = None

        def accum(z, sum_ref, sq_ref):
            if valid is not None:
                z = jnp.where(valid, z, 0.0)
            sum_ref[...] += jnp.sum(z, axis=1, keepdims=True)
            sq_ref[...] += jnp.sum(z * z, axis=1, keepdims=True)

        def bn_affine(s, q, g, b):
            # One-pass stats folded into a per-channel affine: z*scale + shift.
            mean = s * inv_count
            var = q * inv_count - mean * mean
            scale = g * jax.lax.rsqrt(var + EPS)
            return scale, b - mean * scale

        x = x_ref[...]                               # (C_in, tile_cols) bf16
        xl, xr = taps(x.astype(jnp.float32))

        def conv1(xc, xlc, xrc):
            # Center tap carries the stacked [w1_center; w_shortcut] rows, so the
            # shortcut's 1x1 conv rides the same MXU push; conv biases are
            # dropped (exactly cancelled by the following BatchNorm mean).
            zc = jnp.dot(wc1_ref[...], xc, preferred_element_type=jnp.float32)
            side = (jnp.dot(wl1_ref[...], xlc, preferred_element_type=jnp.float32)
                    + jnp.dot(wr1_ref[...], xrc, preferred_element_type=jnp.float32))
            if use_projection:
                return zc[:planes] + side, zc[planes:]
            return zc + side, None

        # ---- phase 0: conv1 (+ shortcut conv) batch statistics --------------
        @pl.when(ph == 0)
        def _():
            @pl.when(t == 0)
            def _():
                for r in (s1_sum, s1_sq, s2_sum, s2_sq, ssc_sum, ssc_sq):
                    if r is not None:
                        r[...] = jnp.zeros_like(r)
            z1, zsc = conv1(x, xl, xr)
            accum(z1, s1_sum, s1_sq)
            if use_projection:
                accum(zsc, ssc_sum, ssc_sq)

        # ---- phase 1: bn2 statistics, finalize every BN affine --------------
        @pl.when(ph == 1)
        def _():
            ci = jax.lax.broadcasted_iota(jnp.int32, (planes, BN_WIDTH), 1)
            bnv = bn_ref[...]                              # (P, 8) f32
            sc1, sh1 = bn_affine(s1_sum[...], s1_sq[...],
                                 _lane_select(bnv, ci, 0),
                                 _lane_select(bnv, ci, 1))
            z1, _ = conv1(x, xl, xr)
            h1 = jnp.maximum(z1 * sc1 + sh1, 0.0)
            h1b = h1.astype(jnp.bfloat16)
            hl, hr = taps(h1)
            z2 = (jnp.dot(wc2_ref[...], h1b, preferred_element_type=jnp.float32)
                  + jnp.dot(wl2_ref[...], hl, preferred_element_type=jnp.float32)
                  + jnp.dot(wr2_ref[...], hr, preferred_element_type=jnp.float32))
            accum(z2, s2_sum, s2_sq)

            # Last step: all sums complete -> emit the packed BN affines.
            @pl.when(t == pl.num_programs(1) - 1)
            def _():
                sc2, sh2 = bn_affine(s2_sum[...], s2_sq[...],
                                     _lane_select(bnv, ci, 2),
                                     _lane_select(bnv, ci, 3))
                cols_out = [sc1, sh1, sc2, sh2]
                if use_projection:
                    scs, shs = bn_affine(ssc_sum[...], ssc_sq[...],
                                         _lane_select(bnv, ci, 4),
                                         _lane_select(bnv, ci, 5))
                    cols_out += [scs, shs]
                aff_ref[...] = _lane_pack(ci, cols_out)

    return kernel


# ----------------------------------------------------------------------------
# Call B: normalize, residual add, write output (tile-parallel)
# ----------------------------------------------------------------------------
def make_apply_kernel(*, l, l_pad, b_tile, planes, use_projection):
    tile_cols = b_tile * l_pad

    def kernel(x_ref, wl1_ref, wc1_ref, wr1_ref, wl2_ref, wc2_ref, wr2_ref,
               aff_ref, out_ref):
        col = jax.lax.broadcasted_iota(jnp.int32, (1, tile_cols), 1)
        pos = col % l_pad
        not_first = pos != 0
        not_last = pos != (l - 1)
        taps = _make_taps(tile_cols, not_first, not_last)

        ci = jax.lax.broadcasted_iota(jnp.int32, (planes, BN_WIDTH), 1)
        aff = aff_ref[...]
        sc1, sh1 = _lane_select(aff, ci, 0), _lane_select(aff, ci, 1)
        sc2, sh2 = _lane_select(aff, ci, 2), _lane_select(aff, ci, 3)

        x = x_ref[...]                        # (C_in, tile_cols) bf16
        x32 = x.astype(jnp.float32)
        xl, xr = taps(x32)

        zc = jnp.dot(wc1_ref[...], x, preferred_element_type=jnp.float32)
        side = (jnp.dot(wl1_ref[...], xl, preferred_element_type=jnp.float32)
                + jnp.dot(wr1_ref[...], xr, preferred_element_type=jnp.float32))
        if use_projection:
            z1 = zc[:planes] + side
            shortcut = (zc[planes:] * _lane_select(aff, ci, 4)
                        + _lane_select(aff, ci, 5))
        else:
            z1 = zc + side
            shortcut = x32

        h1 = jnp.maximum(z1 * sc1 + sh1, 0.0)
        h1b = h1.astype(jnp.bfloat16)
        hl, hr = taps(h1)
        z2 = (jnp.dot(wc2_ref[...], h1b, preferred_element_type=jnp.float32)
              + jnp.dot(wl2_ref[...], hl, preferred_element_type=jnp.float32)
              + jnp.dot(wr2_ref[...], hr, preferred_element_type=jnp.float32))
        h2 = jnp.maximum(z2 * sc2 + sh2, 0.0)

        out_ref[...] = h2 + shortcut          # padded columns dropped by caller

    return kernel


# ----------------------------------------------------------------------------
# Wrapper: tiling choice, layout plumbing, pallas_calls
# ----------------------------------------------------------------------------
def _choose_tiling(n, l, target_cols):
    """Whole-sample column tiles whose width is always a multiple of 128 lanes."""
    g = math.gcd(l, LANE)
    bt_unit = LANE // g              # smallest sample group that is lane-dense
    if bt_unit * l > 4 * max(target_cols, LANE):
        # Grouping whole samples would force an oversized tile: pad L instead
        # (padding columns are masked out of the BN statistics in-kernel).
        l_pad = -(-l // LANE) * LANE
        bt_unit = 1
    else:
        l_pad = l
    b_tile = bt_unit * max(1, target_cols // (bt_unit * l_pad))
    b_tile = max(bt_unit, min(b_tile, -(-n // bt_unit) * bt_unit))
    n_pad = -(-n // b_tile) * b_tile
    return l_pad, b_tile, n_pad


def basic_block_forward(x, params, *, target_tile_cols=None):
    """x: (N, C_in, L) float32 -- same layout as the PyTorch Conv1d input."""
    n, cin, l = x.shape
    planes = params["conv1_w"].shape[0]
    use_projection = "sc_w" in params

    # ---- generation-aware tile sizing / VMEM budget ---------------------------
    try:
        vmem_cap = int(getattr(pltpu.get_tpu_info(), "vmem_capacity_bytes",
                               64 << 20))
    except Exception:
        vmem_cap = 64 << 20                     # conservative (v7x per-TC)
    vmem_cap = min(max(vmem_cap, 32 << 20), 256 << 20)
    # rough live bytes per column: bf16 x (+shifted taps) plus ~planes-wide
    # f32/bf16 temporaries (z1/zc, h1, h1b + taps, z2, h2, out, pipeline bufs)
    per_col = 8 * cin + 40 * planes + 64
    if target_tile_cols is None:
        target_tile_cols = int(min(4096, max(256, (vmem_cap // 4) // per_col)))
    target_tile_cols = max(LANE, (target_tile_cols // LANE) * LANE)

    l_pad, b_tile, n_pad = _choose_tiling(n, l, target_tile_cols)
    tile_cols = b_tile * l_pad
    assert tile_cols % LANE == 0
    num_tiles = n_pad // b_tile
    needs_mask = (l_pad != l) or (n_pad != n)

    est = tile_cols * per_col + (1 << 20)
    vmem_limit = int(min(int(0.9 * vmem_cap), max(2 * est, 32 << 20)))

    # ---- operand layout plumbing ----------------------------------------------
    # (N, C, L) -> (C, N_pad * L_pad), length fastest, zero padded; bf16 operand.
    xt = jnp.transpose(x, (1, 0, 2)).astype(jnp.float32)
    if l_pad != l:
        xt = jnp.pad(xt, ((0, 0), (0, 0), (0, l_pad - l)))
    if n_pad != n:
        xt = jnp.pad(xt, ((0, 0), (0, n_pad - n), (0, 0)))
    x_flat = xt.reshape(cin, n_pad * l_pad).astype(jnp.bfloat16)

    # k=3 conv taps as three (M, C) matrices; conv biases dropped (cancelled by
    # the following BatchNorm's mean subtraction).
    w1 = params["conv1_w"].astype(jnp.float32)           # (P, C_in, 3)
    w2 = params["conv2_w"].astype(jnp.float32)           # (P, P, 3)
    wl1, wc1, wr1 = w1[:, :, 0], w1[:, :, 1], w1[:, :, 2]
    wl2, wc2, wr2 = w2[:, :, 0], w2[:, :, 1], w2[:, :, 2]
    if use_projection:
        # Stack the 1x1 shortcut weights under the conv1 center tap.
        wc1 = jnp.concatenate(
            [wc1, params["sc_w"][:, :, 0].astype(jnp.float32)], axis=0)  # (2P, C)
    weights = [w.astype(jnp.bfloat16) for w in (wl1, wc1, wr1, wl2, wc2, wr2)]
    m1 = 2 * planes if use_projection else planes
    w_shapes = [(planes, cin), (m1, cin), (planes, cin),
                (planes, planes), (planes, planes), (planes, planes)]

    # BN affine parameters packed into ONE (P, 8) operand:
    # columns = [g1, b1, g2, b2, g_sc, b_sc, 0, 0].
    zcol = jnp.zeros((planes,), jnp.float32)
    bn_cols = [params["bn1_g"], params["bn1_b"], params["bn2_g"], params["bn2_b"]]
    bn_cols += ([params["sc_bn_g"], params["sc_bn_b"]] if use_projection
                else [zcol, zcol])
    bn_cols += [zcol, zcol]
    bn_packed = jnp.stack([c.astype(jnp.float32) for c in bn_cols], axis=1)

    # ---- call A: BN batch statistics -> packed scale/shift --------------------
    stats_kernel = make_stats_kernel(
        n=n, l=l, l_pad=l_pad, b_tile=b_tile, planes=planes,
        use_projection=use_projection, needs_mask=needs_mask)
    n_stats = 6 if use_projection else 4
    affine = pl.pallas_call(
        stats_kernel,
        out_shape=jax.ShapeDtypeStruct((planes, BN_WIDTH), jnp.float32),
        grid=(2, num_tiles),
        in_specs=[pl.BlockSpec((cin, tile_cols), lambda ph, t: (0, t))]
                 + [pl.BlockSpec(s, lambda ph, t: (0, 0)) for s in w_shapes]
                 + [pl.BlockSpec((planes, BN_WIDTH), lambda ph, t: (0, 0))],
        out_specs=pl.BlockSpec((planes, BN_WIDTH), lambda ph, t: (0, 0)),
        scratch_shapes=[pltpu.VMEM((planes, 1), jnp.float32)] * n_stats,
        compiler_params=pltpu.CompilerParams(
            # Cross-tile BN accumulation and phase ordering are sequential.
            dimension_semantics=("arbitrary", "arbitrary"),
            vmem_limit_bytes=vmem_limit),
    )(x_flat, *weights, bn_packed)

    # ---- call B: normalize + residual add, tile-parallel ----------------------
    apply_kernel = make_apply_kernel(
        l=l, l_pad=l_pad, b_tile=b_tile, planes=planes,
        use_projection=use_projection)
    out_flat = pl.pallas_call(
        apply_kernel,
        out_shape=jax.ShapeDtypeStruct((planes, n_pad * l_pad), jnp.float32),
        grid=(num_tiles,),
        in_specs=[pl.BlockSpec((cin, tile_cols), lambda t: (0, t))]
                 + [pl.BlockSpec(s, lambda t: (0, 0)) for s in w_shapes]
                 + [pl.BlockSpec((planes, BN_WIDTH), lambda t: (0, 0))],
        out_specs=pl.BlockSpec((planes, tile_cols), lambda t: (0, t)),
        compiler_params=pltpu.CompilerParams(
            # No cross-tile state -> dual-TC / megacore may split the tiles.
            dimension_semantics=("parallel",),
            vmem_limit_bytes=vmem_limit),
    )(x_flat, *weights, affine)

    # (P, N_pad*L_pad) -> (N, P, L), dropping padded samples / columns.
    out = out_flat.reshape(planes, n_pad, l_pad).transpose(1, 0, 2)
    return out[:n, :, :l]


# ----------------------------------------------------------------------------
# Pure-JAX reference (mirrors the PyTorch forward in training mode, f32)
# ----------------------------------------------------------------------------
def reference_forward(x, p):
    def conv(z, w, b, pad):
        y = jax.lax.conv_general_dilated(
            z, w, window_strides=(1,), padding=[(pad, pad)],
            dimension_numbers=("NCH", "OIH", "NCH"))
        return y + b[None, :, None]

    def bn(z, g, be):
        mean = z.mean(axis=(0, 2), keepdims=True)
        var = ((z - mean) ** 2).mean(axis=(0, 2), keepdims=True)
        return g[None, :, None] * (z - mean) * jax.lax.rsqrt(var + EPS) \
            + be[None, :, None]

    out = jax.nn.relu(bn(conv(x, p["conv1_w"], p["conv1_b"], 1),
                         p["bn1_g"], p["bn1_b"]))
    out = jax.nn.relu(bn(conv(out, p["conv2_w"], p["conv2_b"], 1),
                         p["bn2_g"], p["bn2_b"]))
    if "sc_w" in p:
        sc = bn(conv(x, p["sc_w"], p["sc_b"], 0), p["sc_bn_g"], p["sc_bn_b"])
    else:
        sc = x
    return out + sc


# ----------------------------------------------------------------------------
# Deterministic parameter init (shapes per BasicBlock.__init__)
# ----------------------------------------------------------------------------
def init_params(key, in_planes, planes):
    ks = jax.random.split(key, 12)
    p = {
        "conv1_w": 0.1 * jax.random.normal(ks[0], (planes, in_planes, 3), jnp.float32),
        "conv1_b": 0.1 * jax.random.normal(ks[1], (planes,), jnp.float32),
        "bn1_g": 1.0 + 0.1 * jax.random.normal(ks[2], (planes,), jnp.float32),
        "bn1_b": 0.1 * jax.random.normal(ks[3], (planes,), jnp.float32),
        "conv2_w": 0.1 * jax.random.normal(ks[4], (planes, planes, 3), jnp.float32),
        "conv2_b": 0.1 * jax.random.normal(ks[5], (planes,), jnp.float32),
        "bn2_g": 1.0 + 0.1 * jax.random.normal(ks[6], (planes,), jnp.float32),
        "bn2_b": 0.1 * jax.random.normal(ks[7], (planes,), jnp.float32),
    }
    if in_planes != planes:
        p["sc_w"] = 0.1 * jax.random.normal(ks[8], (planes, in_planes, 1), jnp.float32)
        p["sc_b"] = 0.1 * jax.random.normal(ks[9], (planes,), jnp.float32)
        p["sc_bn_g"] = 1.0 + 0.1 * jax.random.normal(ks[10], (planes,), jnp.float32)
        p["sc_bn_b"] = 0.1 * jax.random.normal(ks[11], (planes,), jnp.float32)
    return p


if __name__ == "__main__":
    key = jax.random.PRNGKey(0)
    kx1, kp1, kx2, kp2, kx3, kp3 = jax.random.split(key, 6)

    def check(x, params, target_tile_cols, tag):
        out = jax.block_until_ready(
            basic_block_forward(x, params, target_tile_cols=target_tile_cols))
        ref = reference_forward(x, params)
        assert out.shape == ref.shape, (tag, out.shape, ref.shape)
        err = jnp.abs(out - ref)
        max_err = float(jnp.max(err))
        mean_err = float(jnp.mean(err))
        # bf16 matmul operands + one-pass batch stats => loose-ish bounds; any
        # structural bug (wrong tap / missing residual / bad BN) is O(1).
        assert max_err < 0.15 and mean_err < 0.03, (tag, max_err, mean_err)

    # Case 1: projection shortcut, two 512-column tiles (4 whole samples each).
    n1, cin1, p1, l1 = 8, 8, 16, 128
    x1 = jax.random.normal(kx1, (n1, cin1, l1), jnp.float32)
    check(x1, init_params(kp1, cin1, p1), 512, "projection")

    # Case 2: identity shortcut, N=6 not a multiple of the 4-sample tile ->
    # exercises the zero-padded fake-sample / BN-mask path across 2 tiles.
    n2, c2, l2 = 6, 8, 128
    x2 = jax.random.normal(kx2, (n2, c2, l2), jnp.float32)
    check(x2, init_params(kp2, c2, c2), 512, "identity")

    # Case 3: projection shortcut with L=64 (samples grouped to stay lane-dense)
    # and odd N=5; tile size chosen automatically from the TPU generation.
    n3, c3, p3, l3 = 5, 8, 16, 64
    x3 = jax.random.normal(kx3, (n3, c3, l3), jnp.float32)
    check(x3, init_params(kp3, c3, p3), None, "l64_auto")

    print("KERNEL_OK")
</pallas_src>

<mosaic_0001>
module attributes {stable_mosaic.version = 11 : i64} {
  func.func @kernel(%arg0: i32, %arg1: i32, %arg2: memref<8x512xbf16, #tpu.memory_space<vmem>>, %arg3: memref<16x8xbf16, #tpu.memory_space<vmem>>, %arg4: memref<32x8xbf16, #tpu.memory_space<vmem>>, %arg5: memref<16x8xbf16, #tpu.memory_space<vmem>>, %arg6: memref<16x16xbf16, #tpu.memory_space<vmem>>, %arg7: memref<16x16xbf16, #tpu.memory_space<vmem>>, %arg8: memref<16x16xbf16, #tpu.memory_space<vmem>>, %arg9: memref<16x8xf32, #tpu.memory_space<vmem>>, %arg10: memref<16x8xf32, #tpu.memory_space<vmem>>, %arg11: memref<16x1xf32, #tpu.memory_space<vmem>>, %arg12: memref<16x1xf32, #tpu.memory_space<vmem>>, %arg13: memref<16x1xf32, #tpu.memory_space<vmem>>, %arg14: memref<16x1xf32, #tpu.memory_space<vmem>>, %arg15: memref<16x1xf32, #tpu.memory_space<vmem>>, %arg16: memref<16x1xf32, #tpu.memory_space<vmem>>) attributes {dimension_semantics = [#tpu.dimension_semantics<arbitrary>, #tpu.dimension_semantics<arbitrary>], iteration_bounds = array<i64: 2, 2>, scalar_prefetch = 0 : i64, scratch_operands = 6 : i64, tpu.core_type = #tpu.core_type<tc>, window_params = [{transform_indices = @transform_0, window_bounds = array<i64: 8, 512>}, {pipeline_mode = #tpu.pipeline_mode<synchronous>, transform_indices = @transform_1, window_bounds = array<i64: 16, 8>}, {pipeline_mode = #tpu.pipeline_mode<synchronous>, transform_indices = @transform_2, window_bounds = array<i64: 32, 8>}, {pipeline_mode = #tpu.pipeline_mode<synchronous>, transform_indices = @transform_3, window_bounds = array<i64: 16, 8>}, {pipeline_mode = #tpu.pipeline_mode<synchronous>, transform_indices = @transform_4, window_bounds = array<i64: 16, 16>}, {pipeline_mode = #tpu.pipeline_mode<synchronous>, transform_indices = @transform_5, window_bounds = array<i64: 16, 16>}, {pipeline_mode = #tpu.pipeline_mode<synchronous>, transform_indices = @transform_6, window_bounds = array<i64: 16, 16>}, {pipeline_mode = #tpu.pipeline_mode<synchronous>, transform_indices = @transform_7, window_bounds = array<i64: 16, 8>}, {pipeline_mode = #tpu.pipeline_mode<synchronous>, transform_indices = @transform_8, window_bounds = array<i64: 16, 8>}]} {
    %0 = tpu.iota {dimensions = array<i32: 1>} : vector<1x512xi32>
    %c128_i32 = arith.constant 128 : i32
    %c0_i32 = arith.constant 0 : i32
    %1 = arith.cmpi eq, %c128_i32, %c0_i32 : i32
    %c1_i32 = arith.constant 1 : i32
    %2 = arith.select %1, %c1_i32, %c128_i32 : i32
    %3 = vector.broadcast %2 : i32 to vector<1x512xi32>
    %4 = arith.remsi %0, %3 : vector<1x512xi32>
    %c0_i32_0 = arith.constant 0 : i32
    %5 = vector.broadcast %c0_i32_0 : i32 to vector<1x512xi32>
    %6 = arith.cmpi ne, %4, %5 : vector<1x512xi32>
    %c0_i32_1 = arith.constant 0 : i32
    %7 = vector.broadcast %c0_i32_1 : i32 to vector<1x512xi32>
    %8 = arith.cmpi slt, %4, %7 : vector<1x512xi32>
    %c0_i32_2 = arith.constant 0 : i32
    %9 = arith.cmpi slt, %2, %c0_i32_2 : i32
    %10 = vector.broadcast %9 : i1 to vector<1x512xi1>
    %11 = vector.broadcast %10 : vector<1x512xi1> to vector<1x512xi1>
    %12 = arith.xori %8, %11 : vector<1x512xi1>
    %13 = arith.andi %12, %6 : vector<1x512xi1>
    %14 = vector.broadcast %2 : i32 to vector<1x512xi32>
    %15 = arith.addi %4, %14 : vector<1x512xi32>
    %16 = arith.select %13, %15, %4 : vector<1x512xi1>, vector<1x512xi32>
    %c0_i32_3 = arith.constant 0 : i32
    %17 = vector.broadcast %c0_i32_3 : i32 to vector<1x512xi32>
    %18 = arith.cmpi ne, %16, %17 : vector<1x512xi32>
    %c127_i32 = arith.constant 127 : i32
    %19 = vector.broadcast %c127_i32 : i32 to vector<1x512xi32>
    %20 = arith.cmpi ne, %16, %19 : vector<1x512xi32>
    %c0 = arith.constant 0 : index
    %c0_4 = arith.constant 0 : index
    %21 = vector.load %arg2[%c0, %c0_4] : memref<8x512xbf16, #tpu.memory_space<vmem>>, vector<8x512xbf16>
    %22 = arith.extf %21 : vector<8x512xbf16> to vector<8x512xf32>
    %c1_i32_5 = arith.constant 1 : i32
    %23 = tpu.dynamic_rotate %22 by %c1_i32_5 dim 1 : vector<8x512xf32>, i32 -> vector<8x512xf32>
    %cst = arith.constant 0.000000e+00 : f32
    %24 = vector.shape_cast %18 : vector<1x512xi1> to vector<1x512xi1>
    %25 = vector.broadcast %24 : vector<1x512xi1> to vector<8x512xi1>
    %26 = vector.broadcast %cst : f32 to vector<8x512xf32>
    %27 = arith.select %25, %23, %26 : vector<8x512xi1>, vector<8x512xf32>
    %c511_i32 = arith.constant 511 : i32
    %28 = tpu.dynamic_rotate %22 by %c511_i32 dim 1 : vector<8x512xf32>, i32 -> vector<8x512xf32>
    %cst_6 = arith.constant 0.000000e+00 : f32
    %29 = vector.shape_cast %20 : vector<1x512xi1> to vector<1x512xi1>
    %30 = vector.broadcast %29 : vector<1x512xi1> to vector<8x512xi1>
    %31 = vector.broadcast %cst_6 : f32 to vector<8x512xf32>
    %32 = arith.select %30, %28, %31 : vector<8x512xi1>, vector<8x512xf32>
    %33 = arith.truncf %27 : vector<8x512xf32> to vector<8x512xbf16>
    %34 = arith.truncf %32 : vector<8x512xf32> to vector<8x512xbf16>
    %c0_i32_7 = arith.constant 0 : i32
    %35 = arith.cmpi eq, %arg0, %c0_i32_7 : i32
    %36 = arith.extui %35 : i1 to i32
    %c0_i32_8 = arith.constant 0 : i32
    %37 = arith.cmpi ne, %36, %c0_i32_8 : i32
    scf.if %37 {
      %c0_i32_11 = arith.constant 0 : i32
      %41 = arith.cmpi eq, %arg1, %c0_i32_11 : i32
      %42 = arith.extui %41 : i1 to i32
      %c0_i32_12 = arith.constant 0 : i32
      %43 = arith.cmpi ne, %42, %c0_i32_12 : i32
      scf.if %43 {
        %cst_42 = arith.constant 0.000000e+00 : f32
        %76 = vector.broadcast %cst_42 : f32 to vector<16x1xf32>
        %c0_43 = arith.constant 0 : index
        %c0_44 = arith.constant 0 : index
        %77 = vector.load %arg11[%c0_43, %c0_44] : memref<16x1xf32, #tpu.memory_space<vmem>>, vector<16x1xf32>
        tpu.vector_store %arg11[%c0_43, %c0_44], %76 {strides = array<i32>} : memref<16x1xf32, #tpu.memory_space<vmem>>, vector<16x1xf32>,
        %cst_45 = arith.constant 0.000000e+00 : f32
        %78 = vector.broadcast %cst_45 : f32 to vector<16x1xf32>
        %c0_46 = arith.constant 0 : index
        %c0_47 = arith.constant 0 : index
        %79 = vector.load %arg12[%c0_46, %c0_47] : memref<16x1xf32, #tpu.memory_space<vmem>>, vector<16x1xf32>
        tpu.vector_store %arg12[%c0_46, %c0_47], %78 {strides = array<i32>} : memref<16x1xf32, #tpu.memory_space<vmem>>, vector<16x1xf32>,
        %cst_48 = arith.constant 0.000000e+00 : f32
        %80 = vector.broadcast %cst_48 : f32 to vector<16x1xf32>
        %c0_49 = arith.constant 0 : index
        %c0_50 = arith.constant 0 : index
        %81 = vector.load %arg13[%c0_49, %c0_50] : memref<16x1xf32, #tpu.memory_space<vmem>>, vector<16x1xf32>
        tpu.vector_store %arg13[%c0_49, %c0_50], %80 {strides = array<i32>} : memref<16x1xf32, #tpu.memory_space<vmem>>, vector<16x1xf32>,
        %cst_51 = arith.constant 0.000000e+00 : f32
        %82 = vector.broadcast %cst_51 : f32 to vector<16x1xf32>
        %c0_52 = arith.constant 0 : index
        %c0_53 = arith.constant 0 : index
        %83 = vector.load %arg14[%c0_52, %c0_53] : memref<16x1xf32, #tpu.memory_space<vmem>>, vector<16x1xf32>
        tpu.vector_store %arg14[%c0_52, %c0_53], %82 {strides = array<i32>} : memref<16x1xf32, #tpu.memory_space<vmem>>, vector<16x1xf32>,
        %cst_54 = arith.constant 0.000000e+00 : f32
        %84 = vector.broadcast %cst_54 : f32 to vector<16x1xf32>
        %c0_55 = arith.constant 0 : index
        %c0_56 = arith.constant 0 : index
        %85 = vector.load %arg15[%c0_55, %c0_56] : memref<16x1xf32, #tpu.memory_space<vmem>>, vector<16x1xf32>
        tpu.vector_store %arg15[%c0_55, %c0_56], %84 {strides = array<i32>} : memref<16x1xf32, #tpu.memory_space<vmem>>, vector<16x1xf32>,
        %cst_57 = arith.constant 0.000000e+00 : f32
        %86 = vector.broadcast %cst_57 : f32 to vector<16x1xf32>
        %c0_58 = arith.constant 0 : index
        %c0_59 = arith.constant 0 : index
        %87 = vector.load %arg16[%c0_58, %c0_59] : memref<16x1xf32, #tpu.memory_space<vmem>>, vector<16x1xf32>
        tpu.vector_store %arg16[%c0_58, %c0_59], %86 {strides = array<i32>} : memref<16x1xf32, #tpu.memory_space<vmem>>, vector<16x1xf32>,
      } else {
      }
      %c0_13 = arith.constant 0 : index
      %c0_14 = arith.constant 0 : index
      %44 = vector.load %arg4[%c0_13, %c0_14] : memref<32x8xbf16, #tpu.memory_space<vmem>>, vector<32x8xbf16>
      %cst_15 = arith.constant dense<0.000000e+00> : vector<32x512xf32>
      %45 = tpu.matmul %44, %21, %cst_15 {dimension_numbers = #tpu.dot_dimension_numbers<[1], [0], [0], [1], [0, 0, 1, 1], [], []>} : vector<32x8xbf16>, vector<8x512xbf16>, vector<32x512xf32> -> vector<32x512xf32>
      %c0_16 = arith.constant 0 : index
      %c0_17 = arith.constant 0 : index
      %46 = vector.load %arg3[%c0_16, %c0_17] : memref<16x8xbf16, #tpu.memory_space<vmem>>, vector<16x8xbf16>
      %cst_18 = arith.constant dense<0.000000e+00> : vector<16x512xf32>
      %47 = tpu.matmul %46, %33, %cst_18 {dimension_numbers = #tpu.dot_dimension_numbers<[1], [0], [0], [1], [0, 0, 1, 1], [], []>} : vector<16x8xbf16>, vector<8x512xbf16>, vector<16x512xf32> -> vector<16x512xf32>
      %c0_19 = arith.constant 0 : index
      %c0_20 = arith.constant 0 : index
      %48 = vector.load %arg5[%c0_19, %c0_20] : memref<16x8xbf16, #tpu.memory_space<vmem>>, vector<16x8xbf16>
      %cst_21 = arith.constant dense<0.000000e+00> : vector<16x512xf32>
      %49 = tpu.matmul %48, %34, %cst_21 {dimension_numbers = #tpu.dot_dimension_numbers<[1], [0], [0], [1], [0, 0, 1, 1], [], []>} : vector<16x8xbf16>, vector<8x512xbf16>, vector<16x512xf32> -> vector<16x512xf32>
      %50 = arith.addf %47, %49 : vector<16x512xf32>
      %51 = vector.extract_strided_slice %45 {offsets = [0, 0], sizes = [16, 512], strides = [1, 1]} : vector<32x512xf32> to vector<16x512xf32>
      %52 = arith.addf %51, %50 : vector<16x512xf32>
      %53 = vector.extract_strided_slice %45 {offsets = [16, 0], sizes = [16, 512], strides = [1, 1]} : vector<32x512xf32> to vector<16x512xf32>
      %c0_22 = arith.constant 0 : index
      %c0_23 = arith.constant 0 : index
      %54 = vector.load %arg11[%c0_22, %c0_23] : memref<16x1xf32, #tpu.memory_space<vmem>>, vector<16x1xf32>
      %cst_24 = arith.constant dense<0.000000e+00> : vector<16xf32>
      %55 = vector.multi_reduction <add>, %52, %cst_24 [1] : vector<16x512xf32> to vector<16xf32>
      %56 = vector.shape_cast %55 : vector<16xf32> to vector<16x1xf32>
      %57 = arith.addf %54, %56 : vector<16x1xf32>
      %c0_25 = arith.constant 0 : index
      %c0_26 = arith.constant 0 : index
      %58 = vector.load %arg11[%c0_25, %c0_26] : memref<16x1xf32, #tpu.memory_space<vmem>>, vector<16x1xf32>
      tpu.vector_store %arg11[%c0_25, %c0_26], %57 {strides = array<i32>} : memref<16x1xf32, #tpu.memory_space<vmem>>, vector<16x1xf32>,
      %c0_27 = arith.constant 0 : index
      %c0_28 = arith.constant 0 : index
      %59 = vector.load %arg12[%c0_27, %c0_28] : memref<16x1xf32, #tpu.memory_space<vmem>>, vector<16x1xf32>
      %60 = arith.mulf %52, %52 : vector<16x512xf32>
      %cst_29 = arith.constant dense<0.000000e+00> : vector<16xf32>
      %61 = vector.multi_reduction <add>, %60, %cst_29 [1] : vector<16x512xf32> to vector<16xf32>
      %62 = vector.shape_cast %61 : vector<16xf32> to vector<16x1xf32>
      %63 = arith.addf %59, %62 : vector<16x1xf32>
      %c0_30 = arith.constant 0 : index
      %c0_31 = arith.constant 0 : index
      %64 = vector.load %arg12[%c0_30, %c0_31] : memref<16x1xf32, #tpu.memory_space<vmem>>, vector<16x1xf32>
      tpu.vector_store %arg12[%c0_30, %c0_31], %63 {strides = array<i32>} : memref<16x1xf32, #tpu.memory_space<vmem>>, vector<16x1xf32>,
      %c0_32 = arith.constant 0 : index
      %c0_33 = arith.constant 0 : index
      %65 = vector.load %arg15[%c0_32, %c0_33] : memref<16x1xf32, #tpu.memory_space<vmem>>, vector<16x1xf32>
      %cst_34 = arith.constant dense<0.000000e+00> : vector<16xf32>
      %66 = vector.multi_reduction <add>, %53, %cst_34 [1] : vector<16x512xf32> to vector<16xf32>
      %67 = vector.shape_cast %66 : vector<16xf32> to vector<16x1xf32>
      %68 = arith.addf %65, %67 : vector<16x1xf32>
      %c0_35 = arith.constant 0 : index
      %c0_36 = arith.constant 0 : index
      %69 = vector.load %arg15[%c0_35, %c0_36] : memref<16x1xf32, #tpu.memory_space<vmem>>, vector<16x1xf32>
      tpu.vector_store %arg15[%c0_35, %c0_36], %68 {strides = array<i32>} : memref<16x1xf32, #tpu.memory_space<vmem>>, vector<16x1xf32>,
      %c0_37 = arith.constant 0 : index
      %c0_38 = arith.constant 0 : index
      %70 = vector.load %arg16[%c0_37, %c0_38] : memref<16x1xf32, #tpu.memory_space<vmem>>, vector<16x1xf32>
      %71 = arith.mulf %53, %53 : vector<16x512xf32>
      %cst_39 = arith.constant dense<0.000000e+00> : vector<16xf32>
      %72 = vector.multi_reduction <add>, %71, %cst_39 [1] : vector<16x512xf32> to vector<16xf32>
      %73 = vector.shape_cast %72 : vector<16xf32> to vector<16x1xf32>
      %74 = arith.addf %70, %73 : vector<16x1xf32>
      %c0_40 = arith.constant 0 : index
      %c0_41 = arith.constant 0 : index
      %75 = vector.load %arg16[%c0_40, %c0_41] : memref<16x1xf32, #tpu.memory_space<vmem>>, vector<16x1xf32>
      tpu.vector_store %arg16[%c0_40, %c0_41], %74 {strides = array<i32>} : memref<16x1xf32, #tpu.memory_space<vmem>>, vector<16x1xf32>,
    } else {
    }
    %c1_i32_9 = arith.constant 1 : i32
    %38 = arith.cmpi eq, %arg0, %c1_i32_9 : i32
    %39 = arith.extui %38 : i1 to i32
    %c0_i32_10 = arith.constant 0 : i32
    %40 = arith.cmpi ne, %39, %c0_i32_10 : i32
    scf.if %40 {
      %41 = tpu.iota {dimensions = array<i32: 1>} : vector<16x8xi32>
      %c0_11 = arith.constant 0 : index
      %c0_12 = arith.constant 0 : index
      %42 = vector.load %arg9[%c0_11, %c0_12] : memref<16x8xf32, #tpu.memory_space<vmem>>, vector<16x8xf32>
      %c0_13 = arith.constant 0 : index
      %c0_14 = arith.constant 0 : index
      %43 = vector.load %arg11[%c0_13, %c0_14] : memref<16x1xf32, #tpu.memory_space<vmem>>, vector<16x1xf32>
      %c0_15 = arith.constant 0 : index
      %c0_16 = arith.constant 0 : index
      %44 = vector.load %arg12[%c0_15, %c0_16] : memref<16x1xf32, #tpu.memory_space<vmem>>, vector<16x1xf32>
      %c0_i32_17 = arith.constant 0 : i32
      %45 = vector.broadcast %c0_i32_17 : i32 to vector<16x8xi32>
      %46 = arith.cmpi eq, %41, %45 : vector<16x8xi32>
      %cst_18 = arith.constant 0.000000e+00 : f32
      %47 = vector.broadcast %cst_18 : f32 to vector<16x8xf32>
      %48 = arith.select %46, %42, %47 : vector<16x8xi1>, vector<16x8xf32>
      %cst_19 = arith.constant dense<0.000000e+00> : vector<16xf32>
      %49 = vector.multi_reduction <add>, %48, %cst_19 [1] : vector<16x8xf32> to vector<16xf32>
      %50 = vector.shape_cast %49 : vector<16xf32> to vector<16x1xf32>
      %c1_i32_20 = arith.constant 1 : i32
      %51 = vector.broadcast %c1_i32_20 : i32 to vector<16x8xi32>
      %52 = arith.cmpi eq, %41, %51 : vector<16x8xi32>
      %cst_21 = arith.constant 0.000000e+00 : f32
      %53 = vector.broadcast %cst_21 : f32 to vector<16x8xf32>
      %54 = arith.select %52, %42, %53 : vector<16x8xi1>, vector<16x8xf32>
      %cst_22 = arith.constant dense<0.000000e+00> : vector<16xf32>
      %55 = vector.multi_reduction <add>, %54, %cst_22 [1] : vector<16x8xf32> to vector<16xf32>
      %56 = vector.shape_cast %55 : vector<16xf32> to vector<16x1xf32>
      %cst_23 = arith.constant 9.765625E-4 : f32
      %57 = vector.broadcast %cst_23 : f32 to vector<16x1xf32>
      %58 = arith.mulf %43, %57 : vector<16x1xf32>
      %cst_24 = arith.constant 9.765625E-4 : f32
      %59 = vector.broadcast %cst_24 : f32 to vector<16x1xf32>
      %60 = arith.mulf %44, %59 : vector<16x1xf32>
      %61 = arith.mulf %58, %58 : vector<16x1xf32>
      %62 = arith.subf %60, %61 : vector<16x1xf32>
      %cst_25 = arith.constant 9.99999974E-6 : f32
      %63 = vector.broadcast %cst_25 : f32 to vector<16x1xf32>
      %64 = arith.addf %62, %63 : vector<16x1xf32>
      %65 = math.rsqrt %64 : vector<16x1xf32>
      %66 = arith.mulf %50, %65 : vector<16x1xf32>
      %67 = arith.mulf %58, %66 : vector<16x1xf32>
      %68 = arith.subf %56, %67 : vector<16x1xf32>
      %c0_26 = arith.constant 0 : index
      %c0_27 = arith.constant 0 : index
      %69 = vector.load %arg4[%c0_26, %c0_27] : memref<32x8xbf16, #tpu.memory_space<vmem>>, vector<32x8xbf16>
      %cst_28 = arith.constant dense<0.000000e+00> : vector<32x512xf32>
      %70 = tpu.matmul %69, %21, %cst_28 {dimension_numbers = #tpu.dot_dimension_numbers<[1], [0], [0], [1], [0, 0, 1, 1], [], []>} : vector<32x8xbf16>, vector<8x512xbf16>, vector<32x512xf32> -> vector<32x512xf32>
      %c0_29 = arith.constant 0 : index
      %c0_30 = arith.constant 0 : index
      %71 = vector.load %arg3[%c0_29, %c0_30] : memref<16x8xbf16, #tpu.memory_space<vmem>>, vector<16x8xbf16>
      %cst_31 = arith.constant dense<0.000000e+00> : vector<16x512xf32>
      %72 = tpu.matmul %71, %33, %cst_31 {dimension_numbers = #tpu.dot_dimension_numbers<[1], [0], [0], [1], [0, 0, 1, 1], [], []>} : vector<16x8xbf16>, vector<8x512xbf16>, vector<16x512xf32> -> vector<16x512xf32>
      %c0_32 = arith.constant 0 : index
      %c0_33 = arith.constant 0 : index
      %73 = vector.load %arg5[%c0_32, %c0_33] : memref<16x8xbf16, #tpu.memory_space<vmem>>, vector<16x8xbf16>
      %cst_34 = arith.constant dense<0.000000e+00> : vector<16x512xf32>
      %74 = tpu.matmul %73, %34, %cst_34 {dimension_numbers = #tpu.dot_dimension_numbers<[1], [0], [0], [1], [0, 0, 1, 1], [], []>} : vector<16x8xbf16>, vector<8x512xbf16>, vector<16x512xf32> -> vector<16x512xf32>
      %75 = arith.addf %72, %74 : vector<16x512xf32>
      %76 = vector.extract_strided_slice %70 {offsets = [0, 0], sizes = [16, 512], strides = [1, 1]} : vector<32x512xf32> to vector<16x512xf32>
      %77 = arith.addf %76, %75 : vector<16x512xf32>
      %78 = vector.broadcast %66 : vector<16x1xf32> to vector<16x512xf32>
      %79 = arith.mulf %77, %78 : vector<16x512xf32>
      %80 = vector.broadcast %68 : vector<16x1xf32> to vector<16x512xf32>
      %81 = arith.addf %79, %80 : vector<16x512xf32>
      %cst_35 = arith.constant 0.000000e+00 : f32
      %82 = vector.broadcast %cst_35 : f32 to vector<16x512xf32>
      %83 = arith.maximumf %81, %82 : vector<16x512xf32>
      %84 = arith.truncf %83 : vector<16x512xf32> to vector<16x512xbf16>
      %c1_i32_36 = arith.constant 1 : i32
      %85 = tpu.dynamic_rotate %83 by %c1_i32_36 dim 1 : vector<16x512xf32>, i32 -> vector<16x512xf32>
      %cst_37 = arith.constant 0.000000e+00 : f32
      %86 = vector.shape_cast %18 : vector<1x512xi1> to vector<1x512xi1>
      %87 = vector.broadcast %86 : vector<1x512xi1> to vector<16x512xi1>
      %88 = vector.broadcast %cst_37 : f32 to vector<16x512xf32>
      %89 = arith.select %87, %85, %88 : vector<16x512xi1>, vector<16x512xf32>
      %c511_i32_38 = arith.constant 511 : i32
      %90 = tpu.dynamic_rotate %83 by %c511_i32_38 dim 1 : vector<16x512xf32>, i32 -> vector<16x512xf32>
      %cst_39 = arith.constant 0.000000e+00 : f32
      %91 = vector.shape_cast %20 : vector<1x512xi1> to vector<1x512xi1>
      %92 = vector.broadcast %91 : vector<1x512xi1> to vector<16x512xi1>
      %93 = vector.broadcast %cst_39 : f32 to vector<16x512xf32>
      %94 = arith.select %92, %90, %93 : vector<16x512xi1>, vector<16x512xf32>
      %95 = arith.truncf %89 : vector<16x512xf32> to vector<16x512xbf16>
      %96 = arith.truncf %94 : vector<16x512xf32> to vector<16x512xbf16>
      %c0_40 = arith.constant 0 : index
      %c0_41 = arith.constant 0 : index
      %97 = vector.load %arg7[%c0_40, %c0_41] : memref<16x16xbf16, #tpu.memory_space<vmem>>, vector<16x16xbf16>
      %cst_42 = arith.constant dense<0.000000e+00> : vector<16x512xf32>
      %98 = tpu.matmul %97, %84, %cst_42 {dimension_numbers = #tpu.dot_dimension_numbers<[1], [0], [0], [1], [0, 0, 1, 1], [], []>} : vector<16x16xbf16>, vector<16x512xbf16>, vector<16x512xf32> -> vector<16x512xf32>
      %c0_43 = arith.constant 0 : index
      %c0_44 = arith.constant 0 : index
      %99 = vector.load %arg6[%c0_43, %c0_44] : memref<16x16xbf16, #tpu.memory_space<vmem>>, vector<16x16xbf16>
      %cst_45 = arith.constant dense<0.000000e+00> : vector<16x512xf32>
      %100 = tpu.matmul %99, %95, %cst_45 {dimension_numbers = #tpu.dot_dimension_numbers<[1], [0], [0], [1], [0, 0, 1, 1], [], []>} : vector<16x16xbf16>, vector<16x512xbf16>, vector<16x512xf32> -> vector<16x512xf32>
      %101 = arith.addf %98, %100 : vector<16x512xf32>
      %c0_46 = arith.constant 0 : index
      %c0_47 = arith.constant 0 : index
      %102 = vector.load %arg8[%c0_46, %c0_47] : memref<16x16xbf16, #tpu.memory_space<vmem>>, vector<16x16xbf16>
      %cst_48 = arith.constant dense<0.000000e+00> : vector<16x512xf32>
      %103 = tpu.matmul %102, %96, %cst_48 {dimension_numbers = #tpu.dot_dimension_numbers<[1], [0], [0], [1], [0, 0, 1, 1], [], []>} : vector<16x16xbf16>, vector<16x512xbf16>, vector<16x512xf32> -> vector<16x512xf32>
      %104 = arith.addf %101, %103 : vector<16x512xf32>
      %c0_49 = arith.constant 0 : index
      %c0_50 = arith.constant 0 : index
      %105 = vector.load %arg13[%c0_49, %c0_50] : memref<16x1xf32, #tpu.memory_space<vmem>>, vector<16x1xf32>
      %cst_51 = arith.constant dense<0.000000e+00> : vector<16xf32>
      %106 = vector.multi_reduction <add>, %104, %cst_51 [1] : vector<16x512xf32> to vector<16xf32>
      %107 = vector.shape_cast %106 : vector<16xf32> to vector<16x1xf32>
      %108 = arith.addf %105, %107 : vector<16x1xf32>
      %c0_52 = arith.constant 0 : index
      %c0_53 = arith.constant 0 : index
      %109 = vector.load %arg13[%c0_52, %c0_53] : memref<16x1xf32, #tpu.memory_space<vmem>>, vector<16x1xf32>
      tpu.vector_store %arg13[%c0_52, %c0_53], %108 {strides = array<i32>} : memref<16x1xf32, #tpu.memory_space<vmem>>, vector<16x1xf32>,
      %c0_54 = arith.constant 0 : index
      %c0_55 = arith.constant 0 : index
      %110 = vector.load %arg14[%c0_54, %c0_55] : memref<16x1xf32, #tpu.memory_space<vmem>>, vector<16x1xf32>
      %111 = arith.mulf %104, %104 : vector<16x512xf32>
      %cst_56 = arith.constant dense<0.000000e+00> : vector<16xf32>
      %112 = vector.multi_reduction <add>, %111, %cst_56 [1] : vector<16x512xf32> to vector<16xf32>
      %113 = vector.shape_cast %112 : vector<16xf32> to vector<16x1xf32>
      %114 = arith.addf %110, %113 : vector<16x1xf32>
      %c0_57 = arith.constant 0 : index
      %c0_58 = arith.constant 0 : index
      %115 = vector.load %arg14[%c0_57, %c0_58] : memref<16x1xf32, #tpu.memory_space<vmem>>, vector<16x1xf32>
      tpu.vector_store %arg14[%c0_57, %c0_58], %114 {strides = array<i32>} : memref<16x1xf32, #tpu.memory_space<vmem>>, vector<16x1xf32>,
      %c1_i32_59 = arith.constant 1 : i32
      %116 = arith.cmpi eq, %arg1, %c1_i32_59 : i32
      %117 = arith.extui %116 : i1 to i32
      %c0_i32_60 = arith.constant 0 : i32
      %118 = arith.cmpi ne, %117, %c0_i32_60 : i32
      scf.if %118 {
        %c0_61 = arith.constant 0 : index
        %c0_62 = arith.constant 0 : index
        %119 = vector.load %arg13[%c0_61, %c0_62] : memref<16x1xf32, #tpu.memory_space<vmem>>, vector<16x1xf32>
        %c0_63 = arith.constant 0 : index
        %c0_64 = arith.constant 0 : index
        %120 = vector.load %arg14[%c0_63, %c0_64] : memref<16x1xf32, #tpu.memory_space<vmem>>, vector<16x1xf32>
        %c2_i32 = arith.constant 2 : i32
        %121 = vector.broadcast %c2_i32 : i32 to vector<16x8xi32>
        %122 = arith.cmpi eq, %41, %121 : vector<16x8xi32>
        %cst_65 = arith.constant 0.000000e+00 : f32
        %123 = vector.broadcast %cst_65 : f32 to vector<16x8xf32>
        %124 = arith.select %122, %42, %123 : vector<16x8xi1>, vector<16x8xf32>
        %cst_66 = arith.constant dense<0.000000e+00> : vector<16xf32>
        %125 = vector.multi_reduction <add>, %124, %cst_66 [1] : vector<16x8xf32> to vector<16xf32>
        %126 = vector.shape_cast %125 : vector<16xf32> to vector<16x1xf32>
        %c3_i32 = arith.constant 3 : i32
        %127 = vector.broadcast %c3_i32 : i32 to vector<16x8xi32>
        %128 = arith.cmpi eq, %41, %127 : vector<16x8xi32>
        %cst_67 = arith.constant 0.000000e+00 : f32
        %129 = vector.broadcast %cst_67 : f32 to vector<16x8xf32>
        %130 = arith.select %128, %42, %129 : vector<16x8xi1>, vector<16x8xf32>
        %cst_68 = arith.constant dense<0.000000e+00> : vector<16xf32>
        %131 = vector.multi_reduction <add>, %130, %cst_68 [1] : vector<16x8xf32> to vector<16xf32>
        %132 = vector.shape_cast %131 : vector<16xf32> to vector<16x1xf32>
        %cst_69 = arith.constant 9.765625E-4 : f32
        %133 = vector.broadcast %cst_69 : f32 to vector<16x1xf32>
        %134 = arith.mulf %119, %133 : vector<16x1xf32>
        %cst_70 = arith.constant 9.765625E-4 : f32
        %135 = vector.broadcast %cst_70 : f32 to vector<16x1xf32>
        %136 = arith.mulf %120, %135 : vector<16x1xf32>
        %137 = arith.mulf %134, %134 : vector<16x1xf32>
        %138 = arith.subf %136, %137 : vector<16x1xf32>
        %cst_71 = arith.constant 9.99999974E-6 : f32
        %139 = vector.broadcast %cst_71 : f32 to vector<16x1xf32>
        %140 = arith.addf %138, %139 : vector<16x1xf32>
        %141 = math.rsqrt %140 : vector<16x1xf32>
        %142 = arith.mulf %126, %141 : vector<16x1xf32>
        %143 = arith.mulf %134, %142 : vector<16x1xf32>
        %144 = arith.subf %132, %143 : vector<16x1xf32>
        %c0_72 = arith.constant 0 : index
        %c0_73 = arith.constant 0 : index
        %145 = vector.load %arg15[%c0_72, %c0_73] : memref<16x1xf32, #tpu.memory_space<vmem>>, vector<16x1xf32>
        %c0_74 = arith.constant 0 : index
        %c0_75 = arith.constant 0 : index
        %146 = vector.load %arg16[%c0_74, %c0_75] : memref<16x1xf32, #tpu.memory_space<vmem>>, vector<16x1xf32>
        %c4_i32 = arith.constant 4 : i32
        %147 = vector.broadcast %c4_i32 : i32 to vector<16x8xi32>
        %148 = arith.cmpi eq, %41, %147 : vector<16x8xi32>
        %cst_76 = arith.constant 0.000000e+00 : f32
        %149 = vector.broadcast %cst_76 : f32 to vector<16x8xf32>
        %150 = arith.select %148, %42, %149 : vector<16x8xi1>, vector<16x8xf32>
        %cst_77 = arith.constant dense<0.000000e+00> : vector<16xf32>
        %151 = vector.multi_reduction <add>, %150, %cst_77 [1] : vector<16x8xf32> to vector<16xf32>
        %152 = vector.shape_cast %151 : vector<16xf32> to vector<16x1xf32>
        %c5_i32 = arith.constant 5 : i32
        %153 = vector.broadcast %c5_i32 : i32 to vector<16x8xi32>
        %154 = arith.cmpi eq, %41, %153 : vector<16x8xi32>
        %cst_78 = arith.constant 0.000000e+00 : f32
        %155 = vector.broadcast %cst_78 : f32 to vector<16x8xf32>
        %156 = arith.select %154, %42, %155 : vector<16x8xi1>, vector<16x8xf32>
        %cst_79 = arith.constant dense<0.000000e+00> : vector<16xf32>
        %157 = vector.multi_reduction <add>, %156, %cst_79 [1] : vector<16x8xf32> to vector<16xf32>
        %158 = vector.shape_cast %157 : vector<16xf32> to vector<16x1xf32>
        %cst_80 = arith.constant 9.765625E-4 : f32
        %159 = vector.broadcast %cst_80 : f32 to vector<16x1xf32>
        %160 = arith.mulf %145, %159 : vector<16x1xf32>
        %cst_81 = arith.constant 9.765625E-4 : f32
        %161 = vector.broadcast %cst_81 : f32 to vector<16x1xf32>
        %162 = arith.mulf %146, %161 : vector<16x1xf32>
        %163 = arith.mulf %160, %160 : vector<16x1xf32>
        %164 = arith.subf %162, %163 : vector<16x1xf32>
        %cst_82 = arith.constant 9.99999974E-6 : f32
        %165 = vector.broadcast %cst_82 : f32 to vector<16x1xf32>
        %166 = arith.addf %164, %165 : vector<16x1xf32>
        %167 = math.rsqrt %166 : vector<16x1xf32>
        %168 = arith.mulf %152, %167 : vector<16x1xf32>
        %169 = arith.mulf %160, %168 : vector<16x1xf32>
        %170 = arith.subf %158, %169 : vector<16x1xf32>
        %cst_83 = arith.constant 0.000000e+00 : f32
        %171 = vector.broadcast %cst_83 : f32 to vector<16x8xf32>
        %c0_i32_84 = arith.constant 0 : i32
        %172 = vector.broadcast %c0_i32_84 : i32 to vector<16x8xi32>
        %173 = arith.cmpi eq, %41, %172 : vector<16x8xi32>
        %174 = vector.shape_cast %66 : vector<16x1xf32> to vector<16x1xf32>
        %175 = vector.broadcast %174 : vector<16x1xf32> to vector<16x8xf32>
        %176 = arith.select %173, %175, %171 : vector<16x8xi1>, vector<16x8xf32>
        %c1_i32_85 = arith.constant 1 : i32
        %177 = vector.broadcast %c1_i32_85 : i32 to vector<16x8xi32>
        %178 = arith.cmpi eq, %41, %177 : vector<16x8xi32>
        %179 = vector.shape_cast %68 : vector<16x1xf32> to vector<16x1xf32>
        %180 = vector.broadcast %179 : vector<16x1xf32> to vector<16x8xf32>
        %181 = arith.select %178, %180, %176 : vector<16x8xi1>, vector<16x8xf32>
        %c2_i32_86 = arith.constant 2 : i32
        %182 = vector.broadcast %c2_i32_86 : i32 to vector<16x8xi32>
        %183 = arith.cmpi eq, %41, %182 : vector<16x8xi32>
        %184 = vector.shape_cast %142 : vector<16x1xf32> to vector<16x1xf32>
        %185 = vector.broadcast %184 : vector<16x1xf32> to vector<16x8xf32>
        %186 = arith.select %183, %185, %181 : vector<16x8xi1>, vector<16x8xf32>
        %c3_i32_87 = arith.constant 3 : i32
        %187 = vector.broadcast %c3_i32_87 : i32 to vector<16x8xi32>
        %188 = arith.cmpi eq, %41, %187 : vector<16x8xi32>
        %189 = vector.shape_cast %144 : vector<16x1xf32> to vector<16x1xf32>
        %190 = vector.broadcast %189 : vector<16x1xf32> to vector<16x8xf32>
        %191 = arith.select %188, %190, %186 : vector<16x8xi1>, vector<16x8xf32>
        %c4_i32_88 = arith.constant 4 : i32
        %192 = vector.broadcast %c4_i32_88 : i32 to vector<16x8xi32>
        %193 = arith.cmpi eq, %41, %192 : vector<16x8xi32>
        %194 = vector.shape_cast %168 : vector<16x1xf32> to vector<16x1xf32>
        %195 = vector.broadcast %194 : vector<16x1xf32> to vector<16x8xf32>
        %196 = arith.select %193, %195, %191 : vector<16x8xi1>, vector<16x8xf32>
        %c5_i32_89 = arith.constant 5 : i32
        %197 = vector.broadcast %c5_i32_89 : i32 to vector<16x8xi32>
        %198 = arith.cmpi eq, %41, %197 : vector<16x8xi32>
        %199 = vector.shape_cast %170 : vector<16x1xf32> to vector<16x1xf32>
        %200 = vector.broadcast %199 : vector<16x1xf32> to vector<16x8xf32>
        %201 = arith.select %198, %200, %196 : vector<16x8xi1>, vector<16x8xf32>
        %c0_90 = arith.constant 0 : index
        %c0_91 = arith.constant 0 : index
        %202 = vector.load %arg10[%c0_90, %c0_91] : memref<16x8xf32, #tpu.memory_space<vmem>>, vector<16x8xf32>
        tpu.vector_store %arg10[%c0_90, %c0_91], %201 {strides = array<i32>} : memref<16x8xf32, #tpu.memory_space<vmem>>, vector<16x8xf32>,
      } else {
      }
    } else {
    }
    return
  }
  func.func @transform_0(%arg0: i32, %arg1: i32) -> (i32, i32) {
    %c0_i32 = arith.constant 0 : i32
    %c0_i32_0 = arith.constant 0 : i32
    return %c0_i32, %arg1 : i32, i32
  }
  func.func @transform_1(%arg0: i32, %arg1: i32) -> (i32, i32) {
    %c0_i32 = arith.constant 0 : i32
    %c0_i32_0 = arith.constant 0 : i32
    %c0_i32_1 = arith.constant 0 : i32
    return %c0_i32, %c0_i32_0 : i32, i32
  }
  func.func @transform_2(%arg0: i32, %arg1: i32) -> (i32, i32) {
    %c0_i32 = arith.constant 0 : i32
    %c0_i32_0 = arith.constant 0 : i32
    %c0_i32_1 = arith.constant 0 : i32
    return %c0_i32, %c0_i32_0 : i32, i32
  }
  func.func @transform_3(%arg0: i32, %arg1: i32) -> (i32, i32) {
    %c0_i32 = arith.constant 0 : i32
    %c0_i32_0 = arith.constant 0 : i32
    %c0_i32_1 = arith.constant 0 : i32
    return %c0_i32, %c0_i32_0 : i32, i32
  }
  func.func @transform_4(%arg0: i32, %arg1: i32) -> (i32, i32) {
    %c0_i32 = arith.constant 0 : i32
    %c0_i32_0 = arith.constant 0 : i32
    %c0_i32_1 = arith.constant 0 : i32
    return %c0_i32, %c0_i32_0 : i32, i32
  }
  func.func @transform_5(%arg0: i32, %arg1: i32) -> (i32, i32) {
    %c0_i32 = arith.constant 0 : i32
    %c0_i32_0 = arith.constant 0 : i32
    %c0_i32_1 = arith.constant 0 : i32
    return %c0_i32, %c0_i32_0 : i32, i32
  }
  func.func @transform_6(%arg0: i32, %arg1: i32) -> (i32, i32) {
    %c0_i32 = arith.constant 0 : i32
    %c0_i32_0 = arith.constant 0 : i32
    %c0_i32_1 = arith.constant 0 : i32
    return %c0_i32, %c0_i32_0 : i32, i32
  }
  func.func @transform_7(%arg0: i32, %arg1: i32) -> (i32, i32) {
    %c0_i32 = arith.constant 0 : i32
    %c0_i32_0 = arith.constant 0 : i32
    %c0_i32_1 = arith.constant 0 : i32
    return %c0_i32, %c0_i32_0 : i32, i32
  }
  func.func @transform_8(%arg0: i32, %arg1: i32) -> (i32, i32) {
    %c0_i32 = arith.constant 0 : i32
    %c0_i32_0 = arith.constant 0 : i32
    %c0_i32_1 = arith.constant 0 : i32
    return %c0_i32, %c0_i32_0 : i32, i32
  }
}

</mosaic_0001>

<llo_original>
// kernel: tpu_custom_call.1
$region0: #{tpu_custom_call.1}
  #allocation0 [shape = 'u32[]', space=smem, size = 0x4, offset = 0x4, fixed_abs, tag = 'smem constant byte address 0x4 - core index']
  #allocation1 [shape = 'u32[72,128]{1,0:T(1,128)}', space=vmem, size = 0x9000, scoped, tag = 'internal scratch']
  #allocation2 [shape = 'f32[16,1]{1,0:T(8,128)}', space=vmem, size = 0x2000, scoped, tag = 'scratch operand']
  #allocation3 [shape = 'f32[16,1]{1,0:T(8,128)}', space=vmem, size = 0x2000, scoped, tag = 'scratch operand']
  #allocation4 [shape = 'f32[16,1]{1,0:T(8,128)}', space=vmem, size = 0x2000, scoped, tag = 'scratch operand']
  #allocation5 [shape = 'f32[16,1]{1,0:T(8,128)}', space=vmem, size = 0x2000, scoped, tag = 'scratch operand']
  #allocation6 [shape = 'f32[16,1]{1,0:T(8,128)}', space=vmem, size = 0x2000, scoped, tag = 'scratch operand']
  #allocation7 [shape = 'f32[16,1]{1,0:T(8,128)}', space=vmem, size = 0x2000, scoped, tag = 'scratch operand']
  %s0 = inlined_call_operand.vmem [shape: bf16[8,1024], index: 0, kind: input, shape index: {}]
  %s1 = inlined_call_operand.vmem [shape: bf16[16,8], index: 1, kind: input, shape index: {}]
  %s2 = inlined_call_operand.vmem [shape: bf16[32,8], index: 2, kind: input, shape index: {}]
  %s3 = inlined_call_operand.vmem [shape: bf16[16,8], index: 3, kind: input, shape index: {}]
  %s4 = inlined_call_operand.vmem [shape: bf16[16,16], index: 4, kind: input, shape index: {}]
  %s5 = inlined_call_operand.vmem [shape: bf16[16,16], index: 5, kind: input, shape index: {}]
  %s6 = inlined_call_operand.vmem [shape: bf16[16,16], index: 6, kind: input, shape index: {}]
  %s7 = inlined_call_operand.vmem [shape: f32[16,8], index: 7, kind: input, shape index: {}]
  %s8 = inlined_call_operand.vmem [shape: f32[16,8], index: 8, kind: output, shape index: {}]
  %s9 = sld [smem:[#allocation0]]
  $region81: #{tpu_custom_call.1} parent=0
    _
  %s11 = ssub.s32 1, %s9
  %s12 = scalar_select 0, %s11, %s9
  loop: start=0, step=1, limit=6
  $region2: #{tpu_custom_call.1} parent=0 // loop_pre_header
    _
  $region3: #{tpu_custom_call.1} parent=0 // loop_header
    %s14 = sphi 0, %s18
    %p15 = scmp.ge.s32.totalorder %s14, 6
    %s21 = sphi 0, %s33
    %s22 = sphi 0, %s29
    %s23 = sphi 0, %s21
    %s24 = sphi 0, %s22
    %s25 = sphi 0, %s23
    %s26 = sphi 0, %s24
    %s36 = sphi 0, %s38
    %s39 = sphi 0, %s36
    %s40 = sphi 0, %s39
    %s56 = sphi 0, %s40
    %s60 = sphi 0, %s60
    %s62 = sphi 0, %s60
    %s63 = sphi 0, %s62
    %s77 = sphi 0, %s63
    %s81 = sphi 0, %s81
    %s83 = sphi 0, %s81
    %s84 = sphi 0, %s83
    %s98 = sphi 0, %s84
    %s102 = sphi 0, %s102
    %s104 = sphi 0, %s102
    %s105 = sphi 0, %s104
    %s119 = sphi 0, %s105
    %s123 = sphi 0, %s123
    %s125 = sphi 0, %s123
    %s126 = sphi 0, %s125
    %s140 = sphi 0, %s126
    %s144 = sphi 0, %s144
    %s146 = sphi 0, %s144
    %s147 = sphi 0, %s146
    %s161 = sphi 0, %s147
    %s165 = sphi 0, %s165
    %s167 = sphi 0, %s165
    %s168 = sphi 0, %s167
    %s182 = sphi 0, %s168
    %s186 = sphi 0, %s186
    %s188 = sphi 0, %s186
    %s189 = sphi 0, %s188
    %s203 = sphi 0, %s189
    %s207 = sphi 0, %s207
    %s209 = sphi 0, %s207
    %s210 = sphi 0, %s209
    %s224 = sphi 0, %s210
  $region4: #{tpu_custom_call.1} parent=0 // loop_header_branch
    %17 = sbr.rel (%p15) target = $region8
  $region5: #{tpu_custom_call.1} parent=0 // loop_body
    %s19 = ssub.s32 %s14, 1
    %s20 = ssub.s32 %s14, 2
    %s27 = sadd.s32 1, %s22
    %p28 = scmp.ge.s32.totalorder %s27, 2
    %s29 = scalar_select %p28, 0, %s27
    %s30 = sadd.s32 1, %s21
    %s31 = scalar_select %p28, %s30, %s21
    %p32 = scmp.ge.s32.totalorder %s31, 2
    %s33 = scalar_select %p32, 0, %s31
    %s34 = ssub.s32 %s22, %s29
    %p35 = scmp.eq.s32.totalorder %s34, 0
    %s37 = sadd.s32 %s36, 1
    %s38 = scalar_select %p35, %s36, %s37
    %p41 = pneg %p35
    %p42 = scmp.eq.s32.totalorder %s14, 3
    %p43 = por %p41, %p42
    %p44 = scmp.ne.s32.totalorder %s36, %s39
    %p45 = scmp.eq.s32.totalorder %s14, 0
    %p46 = por %p44, %p45
    %p47 = scmp.ne.s32.totalorder %s36, %s39
    %p48 = scmp.eq.s32.totalorder %s19, 3
    %p49 = por %p47, %p48
    %p50 = scmp.ne.s32.totalorder %s39, %s40
    %p51 = scmp.eq.s32.totalorder %s19, 0
    %p52 = por %p50, %p51
    %p53 = scmp.ne.s32.totalorder %s39, %s40
    %p54 = scmp.eq.s32.totalorder %s20, 3
    %p55 = por %p53, %p54
    %p57 = scmp.ne.s32.totalorder %s40, %s56
    %p58 = scmp.eq.s32.totalorder %s20, 0
    %p59 = por %p57, %p58
    %s61 = sadd.s32 %s60, 1
    %p64 = scmp.eq.s32.totalorder %s14, 3
    %p65 = scmp.ne.s32.totalorder %s60, %s62
    %p66 = scmp.eq.s32.totalorder %s14, 0
    %p67 = por %p65, %p66
    %p68 = scmp.ne.s32.totalorder %s60, %s62
    %p69 = scmp.eq.s32.totalorder %s19, 3
    %p70 = por %p68, %p69
    %p71 = scmp.ne.s32.totalorder %s62, %s63
    %p72 = scmp.eq.s32.totalorder %s19, 0
    %p73 = por %p71, %p72
    %p74 = scmp.ne.s32.totalorder %s62, %s63
    %p75 = scmp.eq.s32.totalorder %s20, 3
    %p76 = por %p74, %p75
    %p78 = scmp.ne.s32.totalorder %s63, %s77
    %p79 = scmp.eq.s32.totalorder %s20, 0
    %p80 = por %p78, %p79
    %s82 = sadd.s32 %s81, 1
    %p85 = scmp.eq.s32.totalorder %s14, 3
    %p86 = scmp.ne.s32.totalorder %s81, %s83
    %p87 = scmp.eq.s32.totalorder %s14, 0
    %p88 = por %p86, %p87
    %p89 = scmp.ne.s32.totalorder %s81, %s83
    %p90 = scmp.eq.s32.totalorder %s19, 3
    %p91 = por %p89, %p90
    %p92 = scmp.ne.s32.totalorder %s83, %s84
    %p93 = scmp.eq.s32.totalorder %s19, 0
    %p94 = por %p92, %p93
    %p95 = scmp.ne.s32.totalorder %s83, %s84
    %p96 = scmp.eq.s32.totalorder %s20, 3
    %p97 = por %p95, %p96
    %p99 = scmp.ne.s32.totalorder %s84, %s98
    %p100 = scmp.eq.s32.totalorder %s20, 0
    %p101 = por %p99, %p100
    %s103 = sadd.s32 %s102, 1
    %p106 = scmp.eq.s32.totalorder %s14, 3
    %p107 = scmp.ne.s32.totalorder %s102, %s104
    %p108 = scmp.eq.s32.totalorder %s14, 0
    %p109 = por %p107, %p108
    %p110 = scmp.ne.s32.totalorder %s102, %s104
    %p111 = scmp.eq.s32.totalorder %s19, 3
    %p112 = por %p110, %p111
    %p113 = scmp.ne.s32.totalorder %s104, %s105
    %p114 = scmp.eq.s32.totalorder %s19, 0
    %p115 = por %p113, %p114
    %p116 = scmp.ne.s32.totalorder %s104, %s105
    %p117 = scmp.eq.s32.totalorder %s20, 3
    %p118 = por %p116, %p117
    %p120 = scmp.ne.s32.totalorder %s105, %s119
    %p121 = scmp.eq.s32.totalorder %s20, 0
    %p122 = por %p120, %p121
    %s124 = sadd.s32 %s123, 1
    %p127 = scmp.eq.s32.totalorder %s14, 3
    %p128 = scmp.ne.s32.totalorder %s123, %s125
    %p129 = scmp.eq.s32.totalorder %s14, 0
    %p130 = por %p128, %p129
    %p131 = scmp.ne.s32.totalorder %s123, %s125
    %p132 = scmp.eq.s32.totalorder %s19, 3
    %p133 = por %p131, %p132
    %p134 = scmp.ne.s32.totalorder %s125, %s126
    %p135 = scmp.eq.s32.totalorder %s19, 0
    %p136 = por %p134, %p135
    %p137 = scmp.ne.s32.totalorder %s125, %s126
    %p138 = scmp.eq.s32.totalorder %s20, 3
    %p139 = por %p137, %p138
    %p141 = scmp.ne.s32.totalorder %s126, %s140
    %p142 = scmp.eq.s32.totalorder %s20, 0
    %p143 = por %p141, %p142
    %s145 = sadd.s32 %s144, 1
    %p148 = scmp.eq.s32.totalorder %s14, 3
    %p149 = scmp.ne.s32.totalorder %s144, %s146
    %p150 = scmp.eq.s32.totalorder %s14, 0
    %p151 = por %p149, %p150
    %p152 = scmp.ne.s32.totalorder %s144, %s146
    %p153 = scmp.eq.s32.totalorder %s19, 3
    %p154 = por %p152, %p153
    %p155 = scmp.ne.s32.totalorder %s146, %s147
    %p156 = scmp.eq.s32.totalorder %s19, 0
    %p157 = por %p155, %p156
    %p158 = scmp.ne.s32.totalorder %s146, %s147
    %p159 = scmp.eq.s32.totalorder %s20, 3
    %p160 = por %p158, %p159
    %p162 = scmp.ne.s32.totalorder %s147, %s161
    %p163 = scmp.eq.s32.totalorder %s20, 0
    %p164 = por %p162, %p163
    %s166 = sadd.s32 %s165, 1
    %p169 = scmp.eq.s32.totalorder %s14, 3
    %p170 = scmp.ne.s32.totalorder %s165, %s167
    %p171 = scmp.eq.s32.totalorder %s14, 0
    %p172 = por %p170, %p171
    %p173 = scmp.ne.s32.totalorder %s165, %s167
    %p174 = scmp.eq.s32.totalorder %s19, 3
    %p175 = por %p173, %p174
    %p176 = scmp.ne.s32.totalorder %s167, %s168
    %p177 = scmp.eq.s32.totalorder %s19, 0
    %p178 = por %p176, %p177
    %p179 = scmp.ne.s32.totalorder %s167, %s168
    %p180 = scmp.eq.s32.totalorder %s20, 3
    %p181 = por %p179, %p180
    %p183 = scmp.ne.s32.totalorder %s168, %s182
    %p184 = scmp.eq.s32.totalorder %s20, 0
    %p185 = por %p183, %p184
    %s187 = sadd.s32 %s186, 1
    %p190 = scmp.eq.s32.totalorder %s14, 3
    %p191 = scmp.ne.s32.totalorder %s186, %s188
    %p192 = scmp.eq.s32.totalorder %s14, 0
    %p193 = por %p191, %p192
    %p194 = scmp.ne.s32.totalorder %s186, %s188
    %p195 = scmp.eq.s32.totalorder %s19, 3
    %p196 = por %p194, %p195
    %p197 = scmp.ne.s32.totalorder %s188, %s189
    %p198 = scmp.eq.s32.totalorder %s19, 0
    %p199 = por %p197, %p198
    %p200 = scmp.ne.s32.totalorder %s188, %s189
    %p201 = scmp.eq.s32.totalorder %s20, 3
    %p202 = por %p200, %p201
    %p204 = scmp.ne.s32.totalorder %s189, %s203
    %p205 = scmp.eq.s32.totalorder %s20, 0
    %p206 = por %p204, %p205
    %s208 = sadd.s32 %s207, 1
    %p211 = scmp.eq.s32.totalorder %s14, 3
    %p212 = scmp.ne.s32.totalorder %s207, %s209
    %p213 = scmp.eq.s32.totalorder %s14, 0
    %p214 = por %p212, %p213
    %p215 = scmp.ne.s32.totalorder %s207, %s209
    %p216 = scmp.eq.s32.totalorder %s19, 3
    %p217 = por %p215, %p216
    %p218 = scmp.ne.s32.totalorder %s209, %s210
    %p219 = scmp.eq.s32.totalorder %s19, 0
    %p220 = por %p218, %p219
    %p221 = scmp.ne.s32.totalorder %s209, %s210
    %p222 = scmp.eq.s32.totalorder %s20, 3
    %p223 = por %p221, %p222
    %p225 = scmp.ne.s32.totalorder %s210, %s224
    %p226 = scmp.eq.s32.totalorder %s20, 0
    %p227 = por %p225, %p226
    %p228 = scmp.le.s32.totalorder 1, %s14
    %p229 = scmp.lt.s32.totalorder %s14, 5
    %p230 = pnand %p228, %p229
    %p231 = pneg %p230
    // Predicated region
    $region9: #{tpu_custom_call.1} parent=5 // pred_check
      _
    $region10: #{tpu_custom_call.1} parent=5 // pred_check_branch
      %233 = sbr.rel (%p230) target = $region12
    $region11: #{tpu_custom_call.1} parent=5 // pred_region
      %s234 = ssub.s32 %s14, 1
      // Predicated region
      $region13: #{tpu_custom_call.1} parent=11 // pred_check
        %p235 = pneg %p73
      $region14: #{tpu_custom_call.1} parent=11 // pred_check_branch
        %237 = sbr.rel (%p235) target = $region16
      $region15: #{tpu_custom_call.1} parent=11 // pred_region
        _
      $region16: #{tpu_custom_call.1} parent=11 // pred_fallthru
        _
      // Predicated region
      $region17: #{tpu_custom_call.1} parent=11 // pred_check
        %p238 = pneg %p94
      $region18: #{tpu_custom_call.1} parent=11 // pred_check_branch
        %240 = sbr.rel (%p238) target = $region20
      $region19: #{tpu_custom_call.1} parent=11 // pred_region
        _
      $region20: #{tpu_custom_call.1} parent=11 // pred_fallthru
        _
      // Predicated region
      $region21: #{tpu_custom_call.1} parent=11 // pred_check
        %p241 = pneg %p115
      $region22: #{tpu_custom_call.1} parent=11 // pred_check_branch
        %243 = sbr.rel (%p241) target = $region24
      $region23: #{tpu_custom_call.1} parent=11 // pred_region
        _
      $region24: #{tpu_custom_call.1} parent=11 // pred_fallthru
        _
      // Predicated region
      $region25: #{tpu_custom_call.1} parent=11 // pred_check
        %p244 = pneg %p136
      $region26: #{tpu_custom_call.1} parent=11 // pred_check_branch
        %246 = sbr.rel (%p244) target = $region28
      $region27: #{tpu_custom_call.1} parent=11 // pred_region
        _
      $region28: #{tpu_custom_call.1} parent=11 // pred_fallthru
        _
      // Predicated region
      $region29: #{tpu_custom_call.1} parent=11 // pred_check
        %p247 = pneg %p157
      $region30: #{tpu_custom_call.1} parent=11 // pred_check_branch
        %249 = sbr.rel (%p247) target = $region32
      $region31: #{tpu_custom_call.1} parent=11 // pred_region
        _
      $region32: #{tpu_custom_call.1} parent=11 // pred_fallthru
        _
      // Predicated region
      $region33: #{tpu_custom_call.1} parent=11 // pred_check
        %p250 = pneg %p178
      $region34: #{tpu_custom_call.1} parent=11 // pred_check_branch
        %252 = sbr.rel (%p250) target = $region36
      $region35: #{tpu_custom_call.1} parent=11 // pred_region
        _
      $region36: #{tpu_custom_call.1} parent=11 // pred_fallthru
        _
      // Predicated region
      $region37: #{tpu_custom_call.1} parent=11 // pred_check
        %p253 = pneg %p199
      $region38: #{tpu_custom_call.1} parent=11 // pred_check_branch
        %255 = sbr.rel (%p253) target = $region40
      $region39: #{tpu_custom_call.1} parent=11 // pred_region
        _
      $region40: #{tpu_custom_call.1} parent=11 // pred_fallthru
        _
    $region12: #{tpu_custom_call.1} parent=5 // pred_fallthru
      _
    %p256 = scmp.lt.s32.totalorder %s14, 4
    // Predicated region
    $region41: #{tpu_custom_call.1} parent=5 // pred_check
      %p257 = pneg %p256
    $region42: #{tpu_custom_call.1} parent=5 // pred_check_branch
      %259 = sbr.rel (%p257) target = $region44
    $region43: #{tpu_custom_call.1} parent=5 // pred_region
      // Predicated region
      $region45: #{tpu_custom_call.1} parent=43 // pred_check
        %p260 = pneg %p46
      $region46: #{tpu_custom_call.1} parent=43 // pred_check_branch
        %262 = sbr.rel (%p260) target = $region48
      $region47: #{tpu_custom_call.1} parent=43 // pred_region
        %s263 = smul.u32 4, %s22
        %p264 = scmp.lt.s32.totalorder %s263, 7
        %s265 = scalar_select %p264, %s263, 7
        %s266 = smul.addr %s265, 4
        %s267 = scalar_lea.vmem %s0, %s266
        %s268 = smul.u32 4, %s22
      $region48: #{tpu_custom_call.1} parent=43 // pred_fallthru
        _
    $region44: #{tpu_custom_call.1} parent=5 // pred_fallthru
      _
    %p269 = scmp.le.s32.totalorder 1, %s14
    %p270 = scmp.lt.s32.totalorder %s14, 5
    %p271 = pnand %p269, %p270
    %p272 = pneg %p271
    // Predicated region
    $region49: #{tpu_custom_call.1} parent=5 // pred_check
      _
    $region50: #{tpu_custom_call.1} parent=5 // pred_check_branch
      %274 = sbr.rel (%p271) target = $region52
    $region51: #{tpu_custom_call.1} parent=5 // pred_region
      %s275 = ssub.s32 %s14, 1
      %s276 = smul.u32 4, %s24
      %p277 = scmp.lt.s32.totalorder %s276, 7
      %s278 = scalar_select %p277, %s276, 7
      %s279 = smul.addr %s278, 4
      %s280 = scalar_lea.vmem %s0, %s279
      %p281 = pneg %p52
      %p282 = pneg %p49
      %p283 = pneg %p73
      %p284 = pneg %p70
      %p285 = pneg %p94
      %p286 = pneg %p91
      %p287 = pneg %p115
      %p288 = pneg %p112
      %p289 = pneg %p136
      %p290 = pneg %p133
      %p291 = pneg %p157
      %p292 = pneg %p154
      %p293 = pneg %p178
      %p294 = pneg %p175
      %p295 = pneg %p199
      %p296 = pneg %p196
      %p297 = pneg %p220
      %p298 = pneg %p217
      %s299 = smul.u32 4, %s24
      %p300 = scmp.lt.s32.totalorder %s299, 7
      %s301 = scalar_select %p300, %s299, 7
      %s302 = smul.addr %s301, 4
      %s303 = scalar_lea.vmem %s0, %s302
      %s304 = smul.u32 4, %s24
      %v306 = vlaneseq
      %v307 = vand.u32 %v306, 127
      %v308 = vadd.s32 %v307, 128
      %v309 = vadd.s32 %v307, 256
      %v310 = vadd.s32 %v307, 384
      %vm311 = vcmp.lt.s32.totalorder %v307, 0
      %v312 = vsub.s32 0, %v307
      %v313 = vsel %vm311, %v312, %v307
      %v314 = vshrl.u32 %v313, 7
      %v315 = vand.u32 %v313, 127
      %v316 = vsub.s32 0, %v315
      %v317 = vsel %vm311, %v316, %v315
      %vm318 = vcmp.lt.s32.totalorder %v308, 0
      %v319 = vsub.s32 0, %v308
      %v320 = vsel %vm318, %v319, %v308
      %v321 = vshrl.u32 %v320, 7
      %v322 = vand.u32 %v320, 127
      %v323 = vsub.s32 0, %v322
      %v324 = vsel %vm318, %v323, %v322
      %vm325 = vcmp.lt.s32.totalorder %v309, 0
      %v326 = vsub.s32 0, %v309
      %v327 = vsel %vm325, %v326, %v309
      %v328 = vshrl.u32 %v327, 7
      %v329 = vand.u32 %v327, 127
      %v330 = vsub.s32 0, %v329
      %v331 = vsel %vm325, %v330, %v329
      %vm332 = vcmp.lt.s32.totalorder %v310, 0
      %v333 = vsub.s32 0, %v310
      %v334 = vsel %vm332, %v333, %v310
      %v335 = vshrl.u32 %v334, 7
      %v336 = vand.u32 %v334, 127
      %v337 = vsub.s32 0, %v336
      %v338 = vsel %vm332, %v337, %v336
      %vm339 = vcmp.ne.s32.totalorder %v317, 0
      %vm340 = vcmp.ne.s32.totalorder %v324, 0
      %vm341 = vcmp.ne.s32.totalorder %v331, 0
      %vm342 = vcmp.ne.s32.totalorder %v338, 0
      %vm343 = vcmp.lt.s32.totalorder %v317, 0
      %vm344 = vcmp.lt.s32.totalorder %v324, 0
      %vm345 = vcmp.lt.s32.totalorder %v331, 0
      %vm346 = vcmp.lt.s32.totalorder %v338, 0
      %vm347 = vmand %vm343, %vm339
      %vm348 = vmand %vm344, %vm340
      %vm349 = vmand %vm345, %vm341
      %vm350 = vmand %vm346, %vm342
      %v351 = vadd.s32 %v317, 128
      %v352 = vadd.s32 %v324, 128
      %v353 = vadd.s32 %v331, 128
      %v354 = vadd.s32 %v338, 128
      %v355 = vsel %vm347, %v351, %v317
      %v356 = vsel %vm348, %v352, %v324
      %v357 = vsel %vm349, %v353, %v331
      %v358 = vsel %vm350, %v354, %v338
      %vm359 = vcmp.ne.s32.totalorder %v355, 0
      %vm360 = vcmp.ne.s32.totalorder %v356, 0
      %vm361 = vcmp.ne.s32.totalorder %v357, 0
      %vm362 = vcmp.ne.s32.totalorder %v358, 0
      %vm363 = vcmp.ne.s32.totalorder %v355, 127
      %vm364 = vcmp.ne.s32.totalorder %v356, 127
      %vm365 = vcmp.ne.s32.totalorder %v357, 127
      %vm366 = vcmp.ne.s32.totalorder %v358, 127
      %v367 = vld [vmem:[%s303] sm:$0xff]
      %v368 = vld [vmem:[%s303 + $0x8] sm:$0xff]
      %v369 = vunpack.c.l.bf16 %v367
      %v370 = vunpack.c.h.bf16 %v367
      %v371 = vunpack.c.l.bf16 %v368
      %v372 = vunpack.c.h.bf16 %v368
      %373 = vrot.lane.b32.xlu0 %v369, 1
      %v374 = vpop.permute.xlu0 %373
      %375 = vrot.lane.b32.xlu0 %v370, 1
      %v376 = vpop.permute.xlu0 %375
      %377 = vrot.lane.b32.xlu0 %v371, 1
      %v378 = vpop.permute.xlu0 %377
      %379 = vrot.lane.b32.xlu0 %v372, 1
      %v380 = vpop.permute.xlu0 %379
      %vm381 = vcmp.lt.s32.totalorder %v307, 1
      %v382 = vsel %vm381, %v378, %v380
      %v383 = vsel %vm381, %v376, %v378
      %v384 = vsel %vm381, %v374, %v376
      %v385 = vsel %vm381, %v380, %v374
      %v386 = vsel %vm359, 1, 0
      %v387 = vsel %vm360, 1, 0
      %v388 = vsel %vm361, 1, 0
      %v389 = vsel %vm362, 1, 0
      %vm390 = vcmp.eq.s32.totalorder %v386, 1
      %vm391 = vcmp.eq.s32.totalorder %v387, 1
      %vm392 = vcmp.eq.s32.totalorder %v388, 1
      %vm393 = vcmp.eq.s32.totalorder %v389, 1
      %v394 = vsel %vm390, %v385, 0.0
      %v395 = vsel %vm391, %v384, 0.0
      %v396 = vsel %vm392, %v383, 0.0
      %v397 = vsel %vm393, %v382, 0.0
      %398 = vrot.lane.b32.xlu0 %v369, 127
      %v399 = vpop.permute.xlu0 %398
      %400 = vrot.lane.b32.xlu0 %v370, 127
      %v401 = vpop.permute.xlu0 %400
      %402 = vrot.lane.b32.xlu0 %v371, 127
      %v403 = vpop.permute.xlu0 %402
      %404 = vrot.lane.b32.xlu0 %v372, 127
      %v405 = vpop.permute.xlu0 %404
      %vm406 = vcmp.lt.s32.totalorder %v307, 127
      %v407 = vsel %vm406, %v403, %v405
      %v408 = vsel %vm406, %v401, %v403
      %v409 = vsel %vm406, %v399, %v401
      %v410 = vsel %vm406, %v405, %v399
      %v411 = vsel %vm363, 1, 0
      %v412 = vsel %vm364, 1, 0
      %v413 = vsel %vm365, 1, 0
      %v414 = vsel %vm366, 1, 0
      %vm415 = vcmp.eq.s32.totalorder %v411, 1
      %vm416 = vcmp.eq.s32.totalorder %v412, 1
      %vm417 = vcmp.eq.s32.totalorder %v413, 1
      %vm418 = vcmp.eq.s32.totalorder %v414, 1
      %v419 = vsel %vm415, %v409, 0.0
      %v420 = vsel %vm416, %v408, 0.0
      %v421 = vsel %vm417, %v407, 0.0
      %v422 = vsel %vm418, %v410, 0.0
      %v423 = vpack.c.bf16 %v394, %v394
      %v424 = vpack.c.bf16 %v395, %v395
      %v425 = vpack.c.bf16 %v396, %v396
      %v426 = vpack.c.bf16 %v397, %v397
      %v427 = vpack.c.bf16 %v419, %v419
      %v428 = vpack.c.bf16 %v420, %v420
      %v429 = vpack.c.bf16 %v421, %v421
      %v430 = vpack.c.bf16 %v422, %v422
      %p431 = scmp.eq.s32.totalorder %s23, 0
      // Predicated region
      $region53: #{tpu_custom_call.1} parent=51 // pred_check
        %p432 = pneg %p431
      $region54: #{tpu_custom_call.1} parent=51 // pred_check_branch
        %434 = sbr.rel (%p432) target = $region56
      $region55: #{tpu_custom_call.1} parent=51 // pred_region
        %p435 = scmp.eq.s32.totalorder %s24, 0
        // Predicated region
        $region57: #{tpu_custom_call.1} parent=55 // pred_check
          %p436 = pneg %p435
        $region58: #{tpu_custom_call.1} parent=55 // pred_check_branch
          %438 = sbr.rel (%p436) target = $region60
        $region59: #{tpu_custom_call.1} parent=55 // pred_region
          %vm439 = vcmask 7168
          %440 = vst.msk [vmem:[#allocation2] sm:$0xff] %vm439, 0.0
          %441 = vst.msk [vmem:[#allocation2 + $0x8] sm:$0xff] %vm439, 0.0
          %442 = vst.msk [vmem:[#allocation3] sm:$0xff] %vm439, 0.0
          %443 = vst.msk [vmem:[#allocation3 + $0x8] sm:$0xff] %vm439, 0.0
          %444 = vst.msk [vmem:[#allocation4] sm:$0xff] %vm439, 0.0
          %445 = vst.msk [vmem:[#allocation4 + $0x8] sm:$0xff] %vm439, 0.0
          %446 = vst.msk [vmem:[#allocation5] sm:$0xff] %vm439, 0.0
          %447 = vst.msk [vmem:[#allocation5 + $0x8] sm:$0xff] %vm439, 0.0
          %448 = vst.msk [vmem:[#allocation6] sm:$0xff] %vm439, 0.0
          %449 = vst.msk [vmem:[#allocation6 + $0x8] sm:$0xff] %vm439, 0.0
          %450 = vst.msk [vmem:[#allocation7] sm:$0xff] %vm439, 0.0
          %451 = vst.msk [vmem:[#allocation7 + $0x8] sm:$0xff] %vm439, 0.0
        $region60: #{tpu_custom_call.1} parent=55 // pred_fallthru
          _
        %v452 = vld [vmem:[%s2] sm:$0xf]
        %v453 = vld [vmem:[%s2 + $0x4] sm:$0xf]
        %v454 = vld [vmem:[%s2 + $0x8] sm:$0xf]
        %v455 = vld [vmem:[%s2 + $0xc] sm:$0xf]
        %v460 = vunpack.c.l.b16 %v452
        %v461 = vunpack.c.l.b16 %v453
        %v462 = vunpack.c.l.b16 %v454
        %v463 = vunpack.c.l.b16 %v455
        %v464 = vpack.c.b16 %v461, %v460
        %v465 = vpack.c.b16 %v463, %v462
        %v468 = vunpack.c.l.b16 %v367
        %v469 = vunpack.c.h.b16 %v367
        %v470 = vunpack.c.l.b16 %v368
        %v471 = vunpack.c.h.b16 %v368
        %v472 = vpack.c.b16 %v468, %v468
        %v473 = vpack.c.b16 %v469, %v469
        %v474 = vpack.c.b16 %v470, %v470
        %v475 = vpack.c.b16 %v471, %v471
        %vm476 = vcmask 64512
        %v478 = vsel %vm476, %v464, 0
        %v481 = vsel %vm476, %v465, 0
        %vm483 = vcmask 1043456
        %v485 = vsel %vm483, %v472, 0
        %v488 = vsel %vm483, %v473, 0
        %v491 = vsel %vm483, %v474, 0
        %v494 = vsel %vm483, %v475, 0
        %496 = vmatpush.bf16.msra.mxu0 0
        %497 = vmatpush.bf16.msra.mxu0 0
        %498 = vmatpush.bf16.msra.mxu0 0
        %499 = vmatpush.bf16.msra.mxu0 0
        %500 = vmatpush.bf16.msra.mxu0 0
        %501 = vmatpush.bf16.msra.mxu0 0
        %502 = vmatpush.bf16.msra.mxu0 0
        %503 = vmatpush.bf16.msra.mxu0 %v485
        %504 = vmatmul.bf16.gmra.mxu0 %v478
        %v505 = vpop.f32.mrf.mxu0
        %v506 = vadd.f32 0.0, %v505
        %v507 = vpop.f32.mrf.mxu0
        %v508 = vadd.f32 0.0, %v507
        %509 = vmatmul.bf16.gmra.mxu0 %v481
        %v510 = vpop.f32.mrf.mxu0
        %v511 = vadd.f32 0.0, %v510
        %v512 = vpop.f32.mrf.mxu0
        %v513 = vadd.f32 0.0, %v512
        %514 = vdwg.mxu0
        %515 = vmatpush.bf16.msra.mxu0 0
        %516 = vmatpush.bf16.msra.mxu0 0
        %517 = vmatpush.bf16.msra.mxu0 0
        %518 = vmatpush.bf16.msra.mxu0 0
        %519 = vmatpush.bf16.msra.mxu0 0
        %520 = vmatpush.bf16.msra.mxu0 0
        %521 = vmatpush.bf16.msra.mxu0 0
        %522 = vmatpush.bf16.msra.mxu0 %v488
        %523 = vmatmul.bf16.gmra.mxu0 %v478
        %v524 = vpop.f32.mrf.mxu0
        %v525 = vadd.f32 0.0, %v524
        %v526 = vpop.f32.mrf.mxu0
        %v527 = vadd.f32 0.0, %v526
        %528 = vmatmul.bf16.gmra.mxu0 %v481
        %v529 = vpop.f32.mrf.mxu0
        %v530 = vadd.f32 0.0, %v529
        %v531 = vpop.f32.mrf.mxu0
        %v532 = vadd.f32 0.0, %v531
        %533 = vdwg.mxu0
        %534 = vmatpush.bf16.msra.mxu0 0
        %535 = vmatpush.bf16.msra.mxu0 0
        %536 = vmatpush.bf16.msra.mxu0 0
        %537 = vmatpush.bf16.msra.mxu0 0
        %538 = vmatpush.bf16.msra.mxu0 0
        %539 = vmatpush.bf16.msra.mxu0 0
        %540 = vmatpush.bf16.msra.mxu0 0
        %541 = vmatpush.bf16.msra.mxu0 %v491
        %542 = vmatmul.bf16.gmra.mxu0 %v478
        %v543 = vpop.f32.mrf.mxu0
        %v544 = vadd.f32 0.0, %v543
        %v545 = vpop.f32.mrf.mxu0
        %v546 = vadd.f32 0.0, %v545
        %547 = vmatmul.bf16.gmra.mxu0 %v481
        %v548 = vpop.f32.mrf.mxu0
        %v549 = vadd.f32 0.0, %v548
        %v550 = vpop.f32.mrf.mxu0
        %v551 = vadd.f32 0.0, %v550
        %552 = vdwg.mxu0
        %553 = vmatpush.bf16.msra.mxu0 0
        %554 = vmatpush.bf16.msra.mxu0 0
        %555 = vmatpush.bf16.msra.mxu0 0
        %556 = vmatpush.bf16.msra.mxu0 0
        %557 = vmatpush.bf16.msra.mxu0 0
        %558 = vmatpush.bf16.msra.mxu0 0
        %559 = vmatpush.bf16.msra.mxu0 0
        %560 = vmatpush.bf16.msra.mxu0 %v494
        %561 = vmatmul.bf16.gmra.mxu0 %v478
        %v562 = vpop.f32.mrf.mxu0
        %v563 = vadd.f32 0.0, %v562
        %v564 = vpop.f32.mrf.mxu0
        %v565 = vadd.f32 0.0, %v564
        %566 = vmatmul.bf16.gmra.mxu0 %v481
        %v567 = vpop.f32.mrf.mxu0
        %v568 = vadd.f32 0.0, %v567
        %v569 = vpop.f32.mrf.mxu0
        %v570 = vadd.f32 0.0, %v569
        %571 = vdwg.mxu0
        %v572 = vld [vmem:[%s1] sm:$0xf]
        %v573 = vld [vmem:[%s1 + $0x4] sm:$0xf]
        %v574 = vld [vmem:[%s3] sm:$0xf]
        %v575 = vld [vmem:[%s3 + $0x4] sm:$0xf]
        %v578 = vunpack.c.l.b16 %v574
        %v579 = vunpack.c.l.b16 %v575
        %v580 = vpack.c.b16 %v579, %v578
        %v582 = vsel %vm476, %v580, 0
        %v585 = vsel %vm483, %v427, 0
        %v588 = vsel %vm483, %v428, 0
        %v591 = vsel %vm483, %v429, 0
        %v594 = vsel %vm483, %v430, 0
        %596 = vmatpush.bf16.msra.mxu0 0
        %597 = vmatpush.bf16.msra.mxu0 0
        %598 = vmatpush.bf16.msra.mxu0 0
        %599 = vmatpush.bf16.msra.mxu0 0
        %600 = vmatpush.bf16.msra.mxu0 0
        %601 = vmatpush.bf16.msra.mxu0 0
        %602 = vmatpush.bf16.msra.mxu0 0
        %603 = vmatpush.bf16.msra.mxu0 %v585
        %604 = vmatmul.bf16.gmra.mxu0 %v582
        %v605 = vpop.f32.mrf.mxu0
        %v606 = vadd.f32 0.0, %v605
        %v607 = vpop.f32.mrf.mxu0
        %v608 = vadd.f32 0.0, %v607
        %609 = vdwg.mxu0
        %610 = vmatpush.bf16.msra.mxu0 0
        %611 = vmatpush.bf16.msra.mxu0 0
        %612 = vmatpush.bf16.msra.mxu0 0
        %613 = vmatpush.bf16.msra.mxu0 0
        %614 = vmatpush.bf16.msra.mxu0 0
        %615 = vmatpush.bf16.msra.mxu0 0
        %616 = vmatpush.bf16.msra.mxu0 0
        %617 = vmatpush.bf16.msra.mxu0 %v588
        %618 = vmatmul.bf16.gmra.mxu0 %v582
        %v619 = vpop.f32.mrf.mxu0
        %v620 = vadd.f32 0.0, %v619
        %v621 = vpop.f32.mrf.mxu0
        %v622 = vadd.f32 0.0, %v621
        %623 = vdwg.mxu0
        %624 = vmatpush.bf16.msra.mxu0 0
        %625 = vmatpush.bf16.msra.mxu0 0
        %626 = vmatpush.bf16.msra.mxu0 0
        %627 = vmatpush.bf16.msra.mxu0 0
        %628 = vmatpush.bf16.msra.mxu0 0
        %629 = vmatpush.bf16.msra.mxu0 0
        %630 = vmatpush.bf16.msra.mxu0 0
        %631 = vmatpush.bf16.msra.mxu0 %v591
        %632 = vmatmul.bf16.gmra.mxu0 %v582
        %v633 = vpop.f32.mrf.mxu0
        %v634 = vadd.f32 0.0, %v633
        %v635 = vpop.f32.mrf.mxu0
        %v636 = vadd.f32 0.0, %v635
        %637 = vdwg.mxu0
        %638 = vmatpush.bf16.msra.mxu0 0
        %639 = vmatpush.bf16.msra.mxu0 0
        %640 = vmatpush.bf16.msra.mxu0 0
        %641 = vmatpush.bf16.msra.mxu0 0
        %642 = vmatpush.bf16.msra.mxu0 0
        %643 = vmatpush.bf16.msra.mxu0 0
        %644 = vmatpush.bf16.msra.mxu0 0
        %645 = vmatpush.bf16.msra.mxu0 %v594
        %646 = vmatmul.bf16.gmra.mxu0 %v582
        %v647 = vpop.f32.mrf.mxu0
        %v648 = vadd.f32 0.0, %v647
        %v649 = vpop.f32.mrf.mxu0
        %v650 = vadd.f32 0.0, %v649
        %651 = vdwg.mxu0
        %v654 = vunpack.c.l.b16 %v572
        %v655 = vunpack.c.l.b16 %v573
        %v656 = vpack.c.b16 %v655, %v654
        %v658 = vsel %vm476, %v656, 0
        %v661 = vsel %vm483, %v423, 0
        %v664 = vsel %vm483, %v424, 0
        %v667 = vsel %vm483, %v425, 0
        %v670 = vsel %vm483, %v426, 0
        %672 = vmatpush.bf16.msra.mxu0 0
        %673 = vmatpush.bf16.msra.mxu0 0
        %674 = vmatpush.bf16.msra.mxu0 0
        %675 = vmatpush.bf16.msra.mxu0 0
        %676 = vmatpush.bf16.msra.mxu0 0
        %677 = vmatpush.bf16.msra.mxu0 0
        %678 = vmatpush.bf16.msra.mxu0 0
        %679 = vmatpush.bf16.msra.mxu0 %v661
        %680 = vmatmul.bf16.gmra.mxu0 %v658
        %v681 = vpop.f32.mrf.mxu0
        %v682 = vadd.f32 %v606, %v681
        %v683 = vpop.f32.mrf.mxu0
        %v684 = vadd.f32 %v608, %v683
        %685 = vdwg.mxu0
        %686 = vmatpush.bf16.msra.mxu0 0
        %687 = vmatpush.bf16.msra.mxu0 0
        %688 = vmatpush.bf16.msra.mxu0 0
        %689 = vmatpush.bf16.msra.mxu0 0
        %690 = vmatpush.bf16.msra.mxu0 0
        %691 = vmatpush.bf16.msra.mxu0 0
        %692 = vmatpush.bf16.msra.mxu0 0
        %693 = vmatpush.bf16.msra.mxu0 %v664
        %694 = vmatmul.bf16.gmra.mxu0 %v658
        %v695 = vpop.f32.mrf.mxu0
        %v696 = vadd.f32 %v620, %v695
        %v697 = vpop.f32.mrf.mxu0
        %v698 = vadd.f32 %v622, %v697
        %699 = vdwg.mxu0
        %700 = vmatpush.bf16.msra.mxu0 0
        %701 = vmatpush.bf16.msra.mxu0 0
        %702 = vmatpush.bf16.msra.mxu0 0
        %703 = vmatpush.bf16.msra.mxu0 0
        %704 = vmatpush.bf16.msra.mxu0 0
        %705 = vmatpush.bf16.msra.mxu0 0
        %706 = vmatpush.bf16.msra.mxu0 0
        %707 = vmatpush.bf16.msra.mxu0 %v667
        %708 = vmatmul.bf16.gmra.mxu0 %v658
        %v709 = vpop.f32.mrf.mxu0
        %v710 = vadd.f32 %v634, %v709
        %v711 = vpop.f32.mrf.mxu0
        %v712 = vadd.f32 %v636, %v711
        %713 = vdwg.mxu0
        %714 = vmatpush.bf16.msra.mxu0 0
        %715 = vmatpush.bf16.msra.mxu0 0
        %716 = vmatpush.bf16.msra.mxu0 0
        %717 = vmatpush.bf16.msra.mxu0 0
        %718 = vmatpush.bf16.msra.mxu0 0
        %719 = vmatpush.bf16.msra.mxu0 0
        %720 = vmatpush.bf16.msra.mxu0 0
        %721 = vmatpush.bf16.msra.mxu0 %v670
        %722 = vmatmul.bf16.gmra.mxu0 %v658
        %v723 = vpop.f32.mrf.mxu0
        %v724 = vadd.f32 %v648, %v723
        %v725 = vpop.f32.mrf.mxu0
        %v726 = vadd.f32 %v650, %v725
        %727 = vdwg.mxu0
        %v728 = vadd.f32 %v506, %v682
        %v729 = vadd.f32 %v525, %v696
        %v730 = vadd.f32 %v544, %v710
        %v731 = vadd.f32 %v563, %v724
        %v732 = vadd.f32 %v508, %v684
        %v733 = vadd.f32 %v527, %v698
        %v734 = vadd.f32 %v546, %v712
        %v735 = vadd.f32 %v565, %v726
        %v736 = vld [vmem:[#allocation2] sm:$0xff]
        %v737 = vld [vmem:[#allocation2 + $0x8] sm:$0xff]
        %v738 = vadd.f32 %v728, %v729
        %v739 = vadd.f32 %v738, %v730
        %v740 = vadd.f32 %v739, %v731
        %741 = vadd.xlane.f32.xlu0 %v740
        %v742 = vpop.xlane.xlu0 %741
        %v743 = vadd.f32 %v732, %v733
        %v744 = vadd.f32 %v743, %v734
        %v745 = vadd.f32 %v744, %v735
        %746 = vadd.xlane.f32.xlu0 %v745
        %v747 = vpop.xlane.xlu0 %746
        %v748 = vadd.f32 %v736, %v742
        %v749 = vadd.f32 %v737, %v747
        %vm750 = vcmask 7168
        %751 = vst.msk [vmem:[#allocation2] sm:$0xff] %vm750, %v748
        %752 = vst.msk [vmem:[#allocation2 + $0x8] sm:$0xff] %vm750, %v749
        %v753 = vld [vmem:[#allocation3] sm:$0xff]
        %v754 = vld [vmem:[#allocation3 + $0x8] sm:$0xff]
        %v755 = vmul.f32 %v728, %v728
        %v756 = vmul.f32 %v729, %v729
        %v757 = vmul.f32 %v730, %v730
        %v758 = vmul.f32 %v731, %v731
        %v759 = vmul.f32 %v732, %v732
        %v760 = vmul.f32 %v733, %v733
        %v761 = vmul.f32 %v734, %v734
        %v762 = vmul.f32 %v735, %v735
        %v763 = vadd.f32 %v755, %v756
        %v764 = vadd.f32 %v763, %v757
        %v765 = vadd.f32 %v764, %v758
        %766 = vadd.xlane.f32.xlu0 %v765
        %v767 = vpop.xlane.xlu0 %766
        %v768 = vadd.f32 %v759, %v760
        %v769 = vadd.f32 %v768, %v761
        %v770 = vadd.f32 %v769, %v762
        %771 = vadd.xlane.f32.xlu0 %v770
        %v772 = vpop.xlane.xlu0 %771
        %v773 = vadd.f32 %v753, %v767
        %v774 = vadd.f32 %v754, %v772
        %775 = vst.msk [vmem:[#allocation3] sm:$0xff] %vm750, %v773
        %776 = vst.msk [vmem:[#allocation3 + $0x8] sm:$0xff] %vm750, %v774
        %v777 = vld [vmem:[#allocation6] sm:$0xff]
        %v778 = vld [vmem:[#allocation6 + $0x8] sm:$0xff]
        %v779 = vadd.f32 %v511, %v530
        %v780 = vadd.f32 %v779, %v549
        %v781 = vadd.f32 %v780, %v568
        %782 = vadd.xlane.f32.xlu0 %v781
        %v783 = vpop.xlane.xlu0 %782
        %v784 = vadd.f32 %v513, %v532
        %v785 = vadd.f32 %v784, %v551
        %v786 = vadd.f32 %v785, %v570
        %787 = vadd.xlane.f32.xlu0 %v786
        %v788 = vpop.xlane.xlu0 %787
        %v789 = vadd.f32 %v777, %v783
        %v790 = vadd.f32 %v778, %v788
        %791 = vst.msk [vmem:[#allocation6] sm:$0xff] %vm750, %v789
        %792 = vst.msk [vmem:[#allocation6 + $0x8] sm:$0xff] %vm750, %v790
        %v793 = vld [vmem:[#allocation7] sm:$0xff]
        %v794 = vld [vmem:[#allocation7 + $0x8] sm:$0xff]
        %v795 = vmul.f32 %v511, %v511
        %v796 = vmul.f32 %v530, %v530
        %v797 = vmul.f32 %v549, %v549
        %v798 = vmul.f32 %v568, %v568
        %v799 = vmul.f32 %v513, %v513
        %v800 = vmul.f32 %v532, %v532
        %v801 = vmul.f32 %v551, %v551
        %v802 = vmul.f32 %v570, %v570
        %v803 = vadd.f32 %v795, %v796
        %v804 = vadd.f32 %v803, %v797
        %v805 = vadd.f32 %v804, %v798
        %806 = vadd.xlane.f32.xlu0 %v805
        %v807 = vpop.xlane.xlu0 %806
        %v808 = vadd.f32 %v799, %v800
        %v809 = vadd.f32 %v808, %v801
        %v810 = vadd.f32 %v809, %v802
        %811 = vadd.xlane.f32.xlu0 %v810
        %v812 = vpop.xlane.xlu0 %811
        %v813 = vadd.f32 %v793, %v807
        %v814 = vadd.f32 %v794, %v812
        %815 = vst.msk [vmem:[#allocation7] sm:$0xff] %vm750, %v813
        %816 = vst.msk [vmem:[#allocation7 + $0x8] sm:$0xff] %vm750, %v814
      $region56: #{tpu_custom_call.1} parent=51 // pred_fallthru
        _
      %p817 = scmp.eq.s32.totalorder %s23, 1
      // Predicated region
      $region61: #{tpu_custom_call.1} parent=51 // pred_check
        %p818 = pneg %p817
      $region62: #{tpu_custom_call.1} parent=51 // pred_check_branch
        %820 = sbr.rel (%p818) target = $region64
      $region63: #{tpu_custom_call.1} parent=51 // pred_region
        %v821 = vld [vmem:[%s7] sm:$0xff]
        %v822 = vld [vmem:[%s7 + $0x8] sm:$0xff]
        %v823 = vld [vmem:[#allocation2] sm:$0xff]
        %v824 = vld [vmem:[#allocation2 + $0x8] sm:$0xff]
        %v825 = vld [vmem:[#allocation3] sm:$0xff]
        %v826 = vld [vmem:[#allocation3 + $0x8] sm:$0xff]
        %vm827 = vcmp.eq.s32.totalorder %v307, 0
        %v828 = vsel %vm827, %v821, 0.0
        %v829 = vsel %vm827, %v822, 0.0
        %vm830 = vcmask 64512
        %v831 = vsel %vm830, %v828, 0.0
        %832 = vadd.xlane.f32.xlu0 %v831
        %v833 = vpop.xlane.xlu0 %832
        %v834 = vsel %vm830, %v829, 0.0
        %835 = vadd.xlane.f32.xlu0 %v834
        %v836 = vpop.xlane.xlu0 %835
        %vm837 = vcmp.eq.s32.totalorder %v307, 1
        %v838 = vsel %vm837, %v821, 0.0
        %v839 = vsel %vm837, %v822, 0.0
        %v840 = vsel %vm830, %v838, 0.0
        %841 = vadd.xlane.f32.xlu0 %v840
        %v842 = vpop.xlane.xlu0 %841
        %v843 = vsel %vm830, %v839, 0.0
        %844 = vadd.xlane.f32.xlu0 %v843
        %v845 = vpop.xlane.xlu0 %844
        %v846 = vmul.f32 %v823, 0.0009765625
        %v847 = vmul.f32 %v824, 0.0009765625
        %v848 = vmul.f32 %v825, 0.0009765625
        %v849 = vmul.f32 %v826, 0.0009765625
        %v850 = vmul.f32 %v846, %v846
        %v851 = vmul.f32 %v847, %v847
        %v852 = vsub.f32 %v848, %v850
        %v853 = vsub.f32 %v849, %v851
        %v854 = vadd.f32 %v852, 1e-05
        %v855 = vadd.f32 %v853, 1e-05
        %v856 = vrsqrt.pop %v854
        %v857 = vmul.f32 %v856, %v854
        %v858 = vmul.f32 %v857, %v856
        %v859 = vmul.f32 0.5, %v858
        %v860 = vsub.f32 1.5, %v859
        %v861 = vmul.f32 %v856, %v860
        %vm862 = vweird.f32 %v854
        %vm863 = vweird.f32 %v856
        %vm864 = vmor %vm862, %vm863
        %v865 = vsel %vm864, %v856, %v861
        %v866 = vrsqrt.pop %v855
        %v867 = vmul.f32 %v866, %v855
        %v868 = vmul.f32 %v867, %v866
        %v869 = vmul.f32 0.5, %v868
        %v870 = vsub.f32 1.5, %v869
        %v871 = vmul.f32 %v866, %v870
        %vm872 = vweird.f32 %v855
        %vm873 = vweird.f32 %v866
        %vm874 = vmor %vm872, %vm873
        %v875 = vsel %vm874, %v866, %v871
        %v876 = vmul.f32 %v833, %v865
        %v877 = vmul.f32 %v836, %v875
        %v878 = vmul.f32 %v846, %v876
        %v879 = vmul.f32 %v847, %v877
        %v880 = vsub.f32 %v842, %v878
        %v881 = vsub.f32 %v845, %v879
        %v882 = vld [vmem:[%s2] sm:$0xf]
        %v883 = vld [vmem:[%s2 + $0x4] sm:$0xf]
        %v884 = vld [vmem:[%s2 + $0x8] sm:$0xf]
        %v885 = vld [vmem:[%s2 + $0xc] sm:$0xf]
        %v890 = vunpack.c.l.b16 %v882
        %v891 = vunpack.c.l.b16 %v883
        %v892 = vunpack.c.l.b16 %v884
        %v893 = vunpack.c.l.b16 %v885
        %v894 = vpack.c.b16 %v891, %v890
        %v895 = vpack.c.b16 %v893, %v892
        %v898 = vunpack.c.l.b16 %v367
        %v899 = vunpack.c.h.b16 %v367
        %v900 = vunpack.c.l.b16 %v368
        %v901 = vunpack.c.h.b16 %v368
        %v902 = vpack.c.b16 %v898, %v898
        %v903 = vpack.c.b16 %v899, %v899
        %v904 = vpack.c.b16 %v900, %v900
        %v905 = vpack.c.b16 %v901, %v901
        %v907 = vsel %vm830, %v894, 0
        %v910 = vsel %vm830, %v895, 0
        %vm912 = vcmask 1043456
        %v914 = vsel %vm912, %v902, 0
        %v917 = vsel %vm912, %v903, 0
        %v920 = vsel %vm912, %v904, 0
        %v923 = vsel %vm912, %v905, 0
        %925 = vmatpush.bf16.msra.mxu0 0
        %926 = vmatpush.bf16.msra.mxu0 0
        %927 = vmatpush.bf16.msra.mxu0 0
        %928 = vmatpush.bf16.msra.mxu0 0
        %929 = vmatpush.bf16.msra.mxu0 0
        %930 = vmatpush.bf16.msra.mxu0 0
        %931 = vmatpush.bf16.msra.mxu0 0
        %932 = vmatpush.bf16.msra.mxu0 %v914
        %933 = vmatmul.bf16.gmra.mxu0 %v907
        %v934 = vpop.f32.mrf.mxu0
        %v935 = vadd.f32 0.0, %v934
        %v936 = vpop.f32.mrf.mxu0
        %v937 = vadd.f32 0.0, %v936
        %938 = vmatmul.bf16.gmra.mxu0 %v910
        %v939 = vpop.f32.mrf.mxu0
        %v940 = vpop.f32.mrf.mxu0
        %941 = vdwg.mxu0
        %942 = vmatpush.bf16.msra.mxu0 0
        %943 = vmatpush.bf16.msra.mxu0 0
        %944 = vmatpush.bf16.msra.mxu0 0
        %945 = vmatpush.bf16.msra.mxu0 0
        %946 = vmatpush.bf16.msra.mxu0 0
        %947 = vmatpush.bf16.msra.mxu0 0
        %948 = vmatpush.bf16.msra.mxu0 0
        %949 = vmatpush.bf16.msra.mxu0 %v917
        %950 = vmatmul.bf16.gmra.mxu0 %v907
        %v951 = vpop.f32.mrf.mxu0
        %v952 = vadd.f32 0.0, %v951
        %v953 = vpop.f32.mrf.mxu0
        %v954 = vadd.f32 0.0, %v953
        %955 = vmatmul.bf16.gmra.mxu0 %v910
        %v956 = vpop.f32.mrf.mxu0
        %v957 = vpop.f32.mrf.mxu0
        %958 = vdwg.mxu0
        %959 = vmatpush.bf16.msra.mxu0 0
        %960 = vmatpush.bf16.msra.mxu0 0
        %961 = vmatpush.bf16.msra.mxu0 0
        %962 = vmatpush.bf16.msra.mxu0 0
        %963 = vmatpush.bf16.msra.mxu0 0
        %964 = vmatpush.bf16.msra.mxu0 0
        %965 = vmatpush.bf16.msra.mxu0 0
        %966 = vmatpush.bf16.msra.mxu0 %v920
        %967 = vmatmul.bf16.gmra.mxu0 %v907
        %v968 = vpop.f32.mrf.mxu0
        %v969 = vadd.f32 0.0, %v968
        %v970 = vpop.f32.mrf.mxu0
        %v971 = vadd.f32 0.0, %v970
        %972 = vmatmul.bf16.gmra.mxu0 %v910
        %v973 = vpop.f32.mrf.mxu0
        %v974 = vpop.f32.mrf.mxu0
        %975 = vdwg.mxu0
        %976 = vmatpush.bf16.msra.mxu0 0
        %977 = vmatpush.bf16.msra.mxu0 0
        %978 = vmatpush.bf16.msra.mxu0 0
        %979 = vmatpush.bf16.msra.mxu0 0
        %980 = vmatpush.bf16.msra.mxu0 0
        %981 = vmatpush.bf16.msra.mxu0 0
        %982 = vmatpush.bf16.msra.mxu0 0
        %983 = vmatpush.bf16.msra.mxu0 %v923
        %984 = vmatmul.bf16.gmra.mxu0 %v907
        %v985 = vpop.f32.mrf.mxu0
        %v986 = vadd.f32 0.0, %v985
        %v987 = vpop.f32.mrf.mxu0
        %v988 = vadd.f32 0.0, %v987
        %989 = vmatmul.bf16.gmra.mxu0 %v910
        %v990 = vpop.f32.mrf.mxu0
        %v991 = vpop.f32.mrf.mxu0
        %992 = vdwg.mxu0
        %v993 = vld [vmem:[%s1] sm:$0xf]
        %v994 = vld [vmem:[%s1 + $0x4] sm:$0xf]
        %v995 = vld [vmem:[%s3] sm:$0xf]
        %v996 = vld [vmem:[%s3 + $0x4] sm:$0xf]
        %v999 = vunpack.c.l.b16 %v995
        %v1000 = vunpack.c.l.b16 %v996
        %v1001 = vpack.c.b16 %v1000, %v999
        %v1003 = vsel %vm830, %v1001, 0
        %v1006 = vsel %vm912, %v427, 0
        %v1009 = vsel %vm912, %v428, 0
        %v1012 = vsel %vm912, %v429, 0
        %v1015 = vsel %vm912, %v430, 0
        %1017 = vmatpush.bf16.msra.mxu0 0
        %1018 = vmatpush.bf16.msra.mxu0 0
        %1019 = vmatpush.bf16.msra.mxu0 0
        %1020 = vmatpush.bf16.msra.mxu0 0
        %1021 = vmatpush.bf16.msra.mxu0 0
        %1022 = vmatpush.bf16.msra.mxu0 0
        %1023 = vmatpush.bf16.msra.mxu0 0
        %1024 = vmatpush.bf16.msra.mxu0 %v1006
        %1025 = vmatmul.bf16.gmra.mxu0 %v1003
        %v1026 = vpop.f32.mrf.mxu0
        %v1027 = vadd.f32 0.0, %v1026
        %v1028 = vpop.f32.mrf.mxu0
        %v1029 = vadd.f32 0.0, %v1028
        %1030 = vdwg.mxu0
        %1031 = vmatpush.bf16.msra.mxu0 0
        %1032 = vmatpush.bf16.msra.mxu0 0
        %1033 = vmatpush.bf16.msra.mxu0 0
        %1034 = vmatpush.bf16.msra.mxu0 0
        %1035 = vmatpush.bf16.msra.mxu0 0
        %1036 = vmatpush.bf16.msra.mxu0 0
        %1037 = vmatpush.bf16.msra.mxu0 0
        %1038 = vmatpush.bf16.msra.mxu0 %v1009
        %1039 = vmatmul.bf16.gmra.mxu0 %v1003
        %v1040 = vpop.f32.mrf.mxu0
        %v1041 = vadd.f32 0.0, %v1040
        %v1042 = vpop.f32.mrf.mxu0
        %v1043 = vadd.f32 0.0, %v1042
        %1044 = vdwg.mxu0
        %1045 = vmatpush.bf16.msra.mxu0 0
        %1046 = vmatpush.bf16.msra.mxu0 0
        %1047 = vmatpush.bf16.msra.mxu0 0
        %1048 = vmatpush.bf16.msra.mxu0 0
        %1049 = vmatpush.bf16.msra.mxu0 0
        %1050 = vmatpush.bf16.msra.mxu0 0
        %1051 = vmatpush.bf16.msra.mxu0 0
        %1052 = vmatpush.bf16.msra.mxu0 %v1012
        %1053 = vmatmul.bf16.gmra.mxu0 %v1003
        %v1054 = vpop.f32.mrf.mxu0
        %v1055 = vadd.f32 0.0, %v1054
        %v1056 = vpop.f32.mrf.mxu0
        %v1057 = vadd.f32 0.0, %v1056
        %1058 = vdwg.mxu0
        %1059 = vmatpush.bf16.msra.mxu0 0
        %1060 = vmatpush.bf16.msra.mxu0 0
        %1061 = vmatpush.bf16.msra.mxu0 0
        %1062 = vmatpush.bf16.msra.mxu0 0
        %1063 = vmatpush.bf16.msra.mxu0 0
        %1064 = vmatpush.bf16.msra.mxu0 0
        %1065 = vmatpush.bf16.msra.mxu0 0
        %1066 = vmatpush.bf16.msra.mxu0 %v1015
        %1067 = vmatmul.bf16.gmra.mxu0 %v1003
        %v1068 = vpop.f32.mrf.mxu0
        %v1069 = vadd.f32 0.0, %v1068
        %v1070 = vpop.f32.mrf.mxu0
        %v1071 = vadd.f32 0.0, %v1070
        %1072 = vdwg.mxu0
        %v1075 = vunpack.c.l.b16 %v993
        %v1076 = vunpack.c.l.b16 %v994
        %v1077 = vpack.c.b16 %v1076, %v1075
        %v1079 = vsel %vm830, %v1077, 0
        %v1082 = vsel %vm912, %v423, 0
        %v1085 = vsel %vm912, %v424, 0
        %v1088 = vsel %vm912, %v425, 0
        %v1091 = vsel %vm912, %v426, 0
        %1093 = vmatpush.bf16.msra.mxu0 0
        %1094 = vmatpush.bf16.msra.mxu0 0
        %1095 = vmatpush.bf16.msra.mxu0 0
        %1096 = vmatpush.bf16.msra.mxu0 0
        %1097 = vmatpush.bf16.msra.mxu0 0
        %1098 = vmatpush.bf16.msra.mxu0 0
        %1099 = vmatpush.bf16.msra.mxu0 0
        %1100 = vmatpush.bf16.msra.mxu0 %v1082
        %1101 = vmatmul.bf16.gmra.mxu0 %v1079
        %v1102 = vpop.f32.mrf.mxu0
        %v1103 = vadd.f32 %v1027, %v1102
        %v1104 = vpop.f32.mrf.mxu0
        %v1105 = vadd.f32 %v1029, %v1104
        %1106 = vdwg.mxu0
        %1107 = vmatpush.bf16.msra.mxu0 0
        %1108 = vmatpush.bf16.msra.mxu0 0
        %1109 = vmatpush.bf16.msra.mxu0 0
        %1110 = vmatpush.bf16.msra.mxu0 0
        %1111 = vmatpush.bf16.msra.mxu0 0
        %1112 = vmatpush.bf16.msra.mxu0 0
        %1113 = vmatpush.bf16.msra.mxu0 0
        %1114 = vmatpush.bf16.msra.mxu0 %v1085
        %1115 = vmatmul.bf16.gmra.mxu0 %v1079
        %v1116 = vpop.f32.mrf.mxu0
        %v1117 = vadd.f32 %v1041, %v1116
        %v1118 = vpop.f32.mrf.mxu0
        %v1119 = vadd.f32 %v1043, %v1118
        %1120 = vdwg.mxu0
        %1121 = vmatpush.bf16.msra.mxu0 0
        %1122 = vmatpush.bf16.msra.mxu0 0
        %1123 = vmatpush.bf16.msra.mxu0 0
        %1124 = vmatpush.bf16.msra.mxu0 0
        %1125 = vmatpush.bf16.msra.mxu0 0
        %1126 = vmatpush.bf16.msra.mxu0 0
        %1127 = vmatpush.bf16.msra.mxu0 0
        %1128 = vmatpush.bf16.msra.mxu0 %v1088
        %1129 = vmatmul.bf16.gmra.mxu0 %v1079
        %v1130 = vpop.f32.mrf.mxu0
        %v1131 = vadd.f32 %v1055, %v1130
        %v1132 = vpop.f32.mrf.mxu0
        %v1133 = vadd.f32 %v1057, %v1132
        %1134 = vdwg.mxu0
        %1135 = vmatpush.bf16.msra.mxu0 0
        %1136 = vmatpush.bf16.msra.mxu0 0
        %1137 = vmatpush.bf16.msra.mxu0 0
        %1138 = vmatpush.bf16.msra.mxu0 0
        %1139 = vmatpush.bf16.msra.mxu0 0
        %1140 = vmatpush.bf16.msra.mxu0 0
        %1141 = vmatpush.bf16.msra.mxu0 0
        %1142 = vmatpush.bf16.msra.mxu0 %v1091
        %1143 = vmatmul.bf16.gmra.mxu0 %v1079
        %v1144 = vpop.f32.mrf.mxu0
        %v1145 = vadd.f32 %v1069, %v1144
        %v1146 = vpop.f32.mrf.mxu0
        %v1147 = vadd.f32 %v1071, %v1146
        %1148 = vdwg.mxu0
        %v1149 = vadd.f32 %v935, %v1103
        %v1150 = vadd.f32 %v952, %v1117
        %v1151 = vadd.f32 %v969, %v1131
        %v1152 = vadd.f32 %v986, %v1145
        %v1153 = vadd.f32 %v937, %v1105
        %v1154 = vadd.f32 %v954, %v1119
        %v1155 = vadd.f32 %v971, %v1133
        %v1156 = vadd.f32 %v988, %v1147
        %1158 = vset.pattern.permute.xlu0 0
        %1159 = vperm.xlu0 %1158, %v876
        %v1160 = vpop.permute.xlu0 %1159
        %1163 = vset.pattern.permute.xlu0 0
        %1164 = vperm.xlu0 %1163, %v877
        %v1165 = vpop.permute.xlu0 %1164
        %v1167 = vmul.f32 %v1149, %v1160
        %v1168 = vmul.f32 %v1150, %v1160
        %v1169 = vmul.f32 %v1151, %v1160
        %v1170 = vmul.f32 %v1152, %v1160
        %v1171 = vmul.f32 %v1153, %v1165
        %v1172 = vmul.f32 %v1154, %v1165
        %v1173 = vmul.f32 %v1155, %v1165
        %v1174 = vmul.f32 %v1156, %v1165
        %1176 = vset.pattern.permute.xlu0 0
        %1177 = vperm.xlu0 %1176, %v880
        %v1178 = vpop.permute.xlu0 %1177
        %1181 = vset.pattern.permute.xlu0 0
        %1182 = vperm.xlu0 %1181, %v881
        %v1183 = vpop.permute.xlu0 %1182
        %v1185 = vadd.f32 %v1167, %v1178
        %v1186 = vadd.f32 %v1168, %v1178
        %v1187 = vadd.f32 %v1169, %v1178
        %v1188 = vadd.f32 %v1170, %v1178
        %v1189 = vadd.f32 %v1171, %v1183
        %v1190 = vadd.f32 %v1172, %v1183
        %v1191 = vadd.f32 %v1173, %v1183
        %v1192 = vadd.f32 %v1174, %v1183
        %v1193 = vmax.f32 %v1185, 0.0
        %v1194 = vmax.f32 %v1186, 0.0
        %v1195 = vmax.f32 %v1187, 0.0
        %v1196 = vmax.f32 %v1188, 0.0
        %v1197 = vmax.f32 %v1189, 0.0
        %v1198 = vmax.f32 %v1190, 0.0
        %v1199 = vmax.f32 %v1191, 0.0
        %v1200 = vmax.f32 %v1192, 0.0
        %v1201 = vpack.c.bf16 %v1197, %v1193
        %v1202 = vpack.c.bf16 %v1198, %v1194
        %v1203 = vpack.c.bf16 %v1199, %v1195
        %v1204 = vpack.c.bf16 %v1200, %v1196
        %1205 = vrot.lane.b32.xlu0 %v1193, 1
        %v1206 = vpop.permute.xlu0 %1205
        %1207 = vrot.lane.b32.xlu0 %v1197, 1
        %v1208 = vpop.permute.xlu0 %1207
        %1209 = vrot.lane.b32.xlu0 %v1194, 1
        %v1210 = vpop.permute.xlu0 %1209
        %1211 = vrot.lane.b32.xlu0 %v1198, 1
        %v1212 = vpop.permute.xlu0 %1211
        %1213 = vrot.lane.b32.xlu0 %v1195, 1
        %v1214 = vpop.permute.xlu0 %1213
        %1215 = vrot.lane.b32.xlu0 %v1199, 1
        %v1216 = vpop.permute.xlu0 %1215
        %1217 = vrot.lane.b32.xlu0 %v1196, 1
        %v1218 = vpop.permute.xlu0 %1217
        %1219 = vrot.lane.b32.xlu0 %v1200, 1
        %v1220 = vpop.permute.xlu0 %1219
        %v1221 = vsel %vm381, %v1214, %v1218
        %v1222 = vsel %vm381, %v1216, %v1220
        %v1223 = vsel %vm381, %v1210, %v1214
        %v1224 = vsel %vm381, %v1212, %v1216
        %v1225 = vsel %vm381, %v1206, %v1210
        %v1226 = vsel %vm381, %v1208, %v1212
        %v1227 = vsel %vm381, %v1218, %v1206
        %v1228 = vsel %vm381, %v1220, %v1208
        %v1229 = vsel %vm390, %v1227, 0.0
        %v1230 = vsel %vm391, %v1225, 0.0
        %v1231 = vsel %vm392, %v1223, 0.0
        %v1232 = vsel %vm393, %v1221, 0.0
        %v1233 = vsel %vm390, %v1228, 0.0
        %v1234 = vsel %vm391, %v1226, 0.0
        %v1235 = vsel %vm392, %v1224, 0.0
        %v1236 = vsel %vm393, %v1222, 0.0
        %1237 = vrot.lane.b32.xlu0 %v1193, 127
        %v1238 = vpop.permute.xlu0 %1237
        %1239 = vrot.lane.b32.xlu0 %v1197, 127
        %v1240 = vpop.permute.xlu0 %1239
        %1241 = vrot.lane.b32.xlu0 %v1194, 127
        %v1242 = vpop.permute.xlu0 %1241
        %1243 = vrot.lane.b32.xlu0 %v1198, 127
        %v1244 = vpop.permute.xlu0 %1243
        %1245 = vrot.lane.b32.xlu0 %v1195, 127
        %v1246 = vpop.permute.xlu0 %1245
        %1247 = vrot.lane.b32.xlu0 %v1199, 127
        %v1248 = vpop.permute.xlu0 %1247
        %1249 = vrot.lane.b32.xlu0 %v1196, 127
        %v1250 = vpop.permute.xlu0 %1249
        %1251 = vrot.lane.b32.xlu0 %v1200, 127
        %v1252 = vpop.permute.xlu0 %1251
        %v1253 = vsel %vm406, %v1246, %v1250
        %v1254 = vsel %vm406, %v1248, %v1252
        %v1255 = vsel %vm406, %v1242, %v1246
        %v1256 = vsel %vm406, %v1244, %v1248
        %v1257 = vsel %vm406, %v1238, %v1242
        %v1258 = vsel %vm406, %v1240, %v1244
        %v1259 = vsel %vm406, %v1250, %v1238
        %v1260 = vsel %vm406, %v1252, %v1240
        %v1261 = vsel %vm415, %v1257, 0.0
        %v1262 = vsel %vm416, %v1255, 0.0
        %v1263 = vsel %vm417, %v1253, 0.0
        %v1264 = vsel %vm418, %v1259, 0.0
        %v1265 = vsel %vm415, %v1258, 0.0
        %v1266 = vsel %vm416, %v1256, 0.0
        %v1267 = vsel %vm417, %v1254, 0.0
        %v1268 = vsel %vm418, %v1260, 0.0
        %v1269 = vpack.c.bf16 %v1233, %v1229
        %v1270 = vpack.c.bf16 %v1234, %v1230
        %v1271 = vpack.c.bf16 %v1235, %v1231
        %v1272 = vpack.c.bf16 %v1236, %v1232
        %v1273 = vpack.c.bf16 %v1265, %v1261
        %v1274 = vpack.c.bf16 %v1266, %v1262
        %v1275 = vpack.c.bf16 %v1267, %v1263
        %v1276 = vpack.c.bf16 %v1268, %v1264
        %v1277 = vld [vmem:[%s5] sm:$0xf]
        %v1278 = vld [vmem:[%s5 + $0x4] sm:$0xf]
        %v1279 = vld [vmem:[%s4] sm:$0xf]
        %v1280 = vld [vmem:[%s4 + $0x4] sm:$0xf]
        %v1283 = vunpack.c.l.b16 %v1279
        %v1284 = vunpack.c.l.b16 %v1280
        %v1285 = vpack.c.b16 %v1284, %v1283
        %vm1286 = vcmask 130048
        %v1288 = vsel %vm1286, %v1285, 0
        %1290 = vmatpush.bf16.msra.mxu0 0
        %1291 = vmatpush.bf16.msra.mxu0 0
        %1292 = vmatpush.bf16.msra.mxu0 0
        %1293 = vmatpush.bf16.msra.mxu0 0
        %1294 = vmatpush.bf16.msra.mxu0 0
        %1295 = vmatpush.bf16.msra.mxu0 0
        %1296 = vmatpush.bf16.msra.mxu0 0
        %1297 = vmatpush.bf16.msra.mxu0 %v1269
        %1298 = vmatmul.bf16.gmra.mxu0 %v1288
        %v1299 = vpop.f32.mrf.mxu0
        %v1300 = vadd.f32 0.0, %v1299
        %v1301 = vpop.f32.mrf.mxu0
        %v1302 = vadd.f32 0.0, %v1301
        %1303 = vdwg.mxu0
        %1304 = vmatpush.bf16.msra.mxu0 0
        %1305 = vmatpush.bf16.msra.mxu0 0
        %1306 = vmatpush.bf16.msra.mxu0 0
        %1307 = vmatpush.bf16.msra.mxu0 0
        %1308 = vmatpush.bf16.msra.mxu0 0
        %1309 = vmatpush.bf16.msra.mxu0 0
        %1310 = vmatpush.bf16.msra.mxu0 0
        %1311 = vmatpush.bf16.msra.mxu0 %v1270
        %1312 = vmatmul.bf16.gmra.mxu0 %v1288
        %v1313 = vpop.f32.mrf.mxu0
        %v1314 = vadd.f32 0.0, %v1313
        %v1315 = vpop.f32.mrf.mxu0
        %v1316 = vadd.f32 0.0, %v1315
        %1317 = vdwg.mxu0
        %1318 = vmatpush.bf16.msra.mxu0 0
        %1319 = vmatpush.bf16.msra.mxu0 0
        %1320 = vmatpush.bf16.msra.mxu0 0
        %1321 = vmatpush.bf16.msra.mxu0 0
        %1322 = vmatpush.bf16.msra.mxu0 0
        %1323 = vmatpush.bf16.msra.mxu0 0
        %1324 = vmatpush.bf16.msra.mxu0 0
        %1325 = vmatpush.bf16.msra.mxu0 %v1271
        %1326 = vmatmul.bf16.gmra.mxu0 %v1288
        %v1327 = vpop.f32.mrf.mxu0
        %v1328 = vadd.f32 0.0, %v1327
        %v1329 = vpop.f32.mrf.mxu0
        %v1330 = vadd.f32 0.0, %v1329
        %1331 = vdwg.mxu0
        %1332 = vmatpush.bf16.msra.mxu0 0
        %1333 = vmatpush.bf16.msra.mxu0 0
        %1334 = vmatpush.bf16.msra.mxu0 0
        %1335 = vmatpush.bf16.msra.mxu0 0
        %1336 = vmatpush.bf16.msra.mxu0 0
        %1337 = vmatpush.bf16.msra.mxu0 0
        %1338 = vmatpush.bf16.msra.mxu0 0
        %1339 = vmatpush.bf16.msra.mxu0 %v1272
        %1340 = vmatmul.bf16.gmra.mxu0 %v1288
        %v1341 = vpop.f32.mrf.mxu0
        %v1342 = vadd.f32 0.0, %v1341
        %v1343 = vpop.f32.mrf.mxu0
        %v1344 = vadd.f32 0.0, %v1343
        %1345 = vdwg.mxu0
        %v1348 = vunpack.c.l.b16 %v1277
        %v1349 = vunpack.c.l.b16 %v1278
        %v1350 = vpack.c.b16 %v1349, %v1348
        %v1352 = vsel %vm1286, %v1350, 0
        %1354 = vmatpush.bf16.msra.mxu0 0
        %1355 = vmatpush.bf16.msra.mxu0 0
        %1356 = vmatpush.bf16.msra.mxu0 0
        %1357 = vmatpush.bf16.msra.mxu0 0
        %1358 = vmatpush.bf16.msra.mxu0 0
        %1359 = vmatpush.bf16.msra.mxu0 0
        %1360 = vmatpush.bf16.msra.mxu0 0
        %1361 = vmatpush.bf16.msra.mxu0 %v1201
        %1362 = vmatmul.bf16.gmra.mxu0 %v1352
        %v1363 = vpop.f32.mrf.mxu0
        %v1364 = vadd.f32 %v1300, %v1363
        %v1365 = vpop.f32.mrf.mxu0
        %v1366 = vadd.f32 %v1302, %v1365
        %1367 = vdwg.mxu0
        %1368 = vmatpush.bf16.msra.mxu0 0
        %1369 = vmatpush.bf16.msra.mxu0 0
        %1370 = vmatpush.bf16.msra.mxu0 0
        %1371 = vmatpush.bf16.msra.mxu0 0
        %1372 = vmatpush.bf16.msra.mxu0 0
        %1373 = vmatpush.bf16.msra.mxu0 0
        %1374 = vmatpush.bf16.msra.mxu0 0
        %1375 = vmatpush.bf16.msra.mxu0 %v1202
        %1376 = vmatmul.bf16.gmra.mxu0 %v1352
        %v1377 = vpop.f32.mrf.mxu0
        %v1378 = vadd.f32 %v1314, %v1377
        %v1379 = vpop.f32.mrf.mxu0
        %v1380 = vadd.f32 %v1316, %v1379
        %1381 = vdwg.mxu0
        %1382 = vmatpush.bf16.msra.mxu0 0
        %1383 = vmatpush.bf16.msra.mxu0 0
        %1384 = vmatpush.bf16.msra.mxu0 0
        %1385 = vmatpush.bf16.msra.mxu0 0
        %1386 = vmatpush.bf16.msra.mxu0 0
        %1387 = vmatpush.bf16.msra.mxu0 0
        %1388 = vmatpush.bf16.msra.mxu0 0
        %1389 = vmatpush.bf16.msra.mxu0 %v1203
        %1390 = vmatmul.bf16.gmra.mxu0 %v1352
        %v1391 = vpop.f32.mrf.mxu0
        %v1392 = vadd.f32 %v1328, %v1391
        %v1393 = vpop.f32.mrf.mxu0
        %v1394 = vadd.f32 %v1330, %v1393
        %1395 = vdwg.mxu0
        %1396 = vmatpush.bf16.msra.mxu0 0
        %1397 = vmatpush.bf16.msra.mxu0 0
        %1398 = vmatpush.bf16.msra.mxu0 0
        %1399 = vmatpush.bf16.msra.mxu0 0
        %1400 = vmatpush.bf16.msra.mxu0 0
        %1401 = vmatpush.bf16.msra.mxu0 0
        %1402 = vmatpush.bf16.msra.mxu0 0
        %1403 = vmatpush.bf16.msra.mxu0 %v1204
        %1404 = vmatmul.bf16.gmra.mxu0 %v1352
        %v1405 = vpop.f32.mrf.mxu0
        %v1406 = vadd.f32 %v1342, %v1405
        %v1407 = vpop.f32.mrf.mxu0
        %v1408 = vadd.f32 %v1344, %v1407
        %1409 = vdwg.mxu0
        %v1410 = vld [vmem:[%s6] sm:$0xf]
        %v1411 = vld [vmem:[%s6 + $0x4] sm:$0xf]
        %v1414 = vunpack.c.l.b16 %v1410
        %v1415 = vunpack.c.l.b16 %v1411
        %v1416 = vpack.c.b16 %v1415, %v1414
        %v1418 = vsel %vm1286, %v1416, 0
        %1420 = vmatpush.bf16.msra.mxu0 0
        %1421 = vmatpush.bf16.msra.mxu0 0
        %1422 = vmatpush.bf16.msra.mxu0 0
        %1423 = vmatpush.bf16.msra.mxu0 0
        %1424 = vmatpush.bf16.msra.mxu0 0
        %1425 = vmatpush.bf16.msra.mxu0 0
        %1426 = vmatpush.bf16.msra.mxu0 0
        %1427 = vmatpush.bf16.msra.mxu0 %v1273
        %1428 = vmatmul.bf16.gmra.mxu0 %v1418
        %v1429 = vpop.f32.mrf.mxu0
        %v1430 = vadd.f32 0.0, %v1429
        %v1431 = vpop.f32.mrf.mxu0
        %v1432 = vadd.f32 0.0, %v1431
        %1433 = vdwg.mxu0
        %1434 = vmatpush.bf16.msra.mxu0 0
        %1435 = vmatpush.bf16.msra.mxu0 0
        %1436 = vmatpush.bf16.msra.mxu0 0
        %1437 = vmatpush.bf16.msra.mxu0 0
        %1438 = vmatpush.bf16.msra.mxu0 0
        %1439 = vmatpush.bf16.msra.mxu0 0
        %1440 = vmatpush.bf16.msra.mxu0 0
        %1441 = vmatpush.bf16.msra.mxu0 %v1274
        %1442 = vmatmul.bf16.gmra.mxu0 %v1418
        %v1443 = vpop.f32.mrf.mxu0
        %v1444 = vadd.f32 0.0, %v1443
        %v1445 = vpop.f32.mrf.mxu0
        %v1446 = vadd.f32 0.0, %v1445
        %1447 = vdwg.mxu0
        %1448 = vmatpush.bf16.msra.mxu0 0
        %1449 = vmatpush.bf16.msra.mxu0 0
        %1450 = vmatpush.bf16.msra.mxu0 0
        %1451 = vmatpush.bf16.msra.mxu0 0
        %1452 = vmatpush.bf16.msra.mxu0 0
        %1453 = vmatpush.bf16.msra.mxu0 0
        %1454 = vmatpush.bf16.msra.mxu0 0
        %1455 = vmatpush.bf16.msra.mxu0 %v1275
        %1456 = vmatmul.bf16.gmra.mxu0 %v1418
        %v1457 = vpop.f32.mrf.mxu0
        %v1458 = vadd.f32 0.0, %v1457
        %v1459 = vpop.f32.mrf.mxu0
        %v1460 = vadd.f32 0.0, %v1459
        %1461 = vdwg.mxu0
        %1462 = vmatpush.bf16.msra.mxu0 0
        %1463 = vmatpush.bf16.msra.mxu0 0
        %1464 = vmatpush.bf16.msra.mxu0 0
        %1465 = vmatpush.bf16.msra.mxu0 0
        %1466 = vmatpush.bf16.msra.mxu0 0
        %1467 = vmatpush.bf16.msra.mxu0 0
        %1468 = vmatpush.bf16.msra.mxu0 0
        %1469 = vmatpush.bf16.msra.mxu0 %v1276
        %1470 = vmatmul.bf16.gmra.mxu0 %v1418
        %v1471 = vpop.f32.mrf.mxu0
        %v1472 = vadd.f32 0.0, %v1471
        %v1473 = vpop.f32.mrf.mxu0
        %v1474 = vadd.f32 0.0, %v1473
        %1475 = vdwg.mxu0
        %v1476 = vadd.f32 %v1364, %v1430
        %v1477 = vadd.f32 %v1378, %v1444
        %v1478 = vadd.f32 %v1392, %v1458
        %v1479 = vadd.f32 %v1406, %v1472
        %v1480 = vadd.f32 %v1366, %v1432
        %v1481 = vadd.f32 %v1380, %v1446
        %v1482 = vadd.f32 %v1394, %v1460
        %v1483 = vadd.f32 %v1408, %v1474
        %v1484 = vld [vmem:[#allocation4] sm:$0xff]
        %v1485 = vld [vmem:[#allocation4 + $0x8] sm:$0xff]
        %v1486 = vadd.f32 %v1476, %v1477
        %v1487 = vadd.f32 %v1486, %v1478
        %v1488 = vadd.f32 %v1487, %v1479
        %1489 = vadd.xlane.f32.xlu0 %v1488
        %v1490 = vpop.xlane.xlu0 %1489
        %v1491 = vadd.f32 %v1480, %v1481
        %v1492 = vadd.f32 %v1491, %v1482
        %v1493 = vadd.f32 %v1492, %v1483
        %1494 = vadd.xlane.f32.xlu0 %v1493
        %v1495 = vpop.xlane.xlu0 %1494
        %v1496 = vadd.f32 %v1484, %v1490
        %v1497 = vadd.f32 %v1485, %v1495
        %vm1498 = vcmask 7168
        %1499 = vst.msk [vmem:[#allocation4] sm:$0xff] %vm1498, %v1496
        %1500 = vst.msk [vmem:[#allocation4 + $0x8] sm:$0xff] %vm1498, %v1497
        %v1501 = vld [vmem:[#allocation5] sm:$0xff]
        %v1502 = vld [vmem:[#allocation5 + $0x8] sm:$0xff]
        %v1503 = vmul.f32 %v1476, %v1476
        %v1504 = vmul.f32 %v1477, %v1477
        %v1505 = vmul.f32 %v1478, %v1478
        %v1506 = vmul.f32 %v1479, %v1479
        %v1507 = vmul.f32 %v1480, %v1480
        %v1508 = vmul.f32 %v1481, %v1481
        %v1509 = vmul.f32 %v1482, %v1482
        %v1510 = vmul.f32 %v1483, %v1483
        %v1511 = vadd.f32 %v1503, %v1504
        %v1512 = vadd.f32 %v1511, %v1505
        %v1513 = vadd.f32 %v1512, %v1506
        %1514 = vadd.xlane.f32.xlu0 %v1513
        %v1515 = vpop.xlane.xlu0 %1514
        %v1516 = vadd.f32 %v1507, %v1508
        %v1517 = vadd.f32 %v1516, %v1509
        %v1518 = vadd.f32 %v1517, %v1510
        %1519 = vadd.xlane.f32.xlu0 %v1518
        %v1520 = vpop.xlane.xlu0 %1519
        %v1521 = vadd.f32 %v1501, %v1515
        %v1522 = vadd.f32 %v1502, %v1520
        %1523 = vst.msk [vmem:[#allocation5] sm:$0xff] %vm1498, %v1521
        %1524 = vst.msk [vmem:[#allocation5 + $0x8] sm:$0xff] %vm1498, %v1522
        %p1525 = scmp.eq.s32.totalorder %s24, 1
        // Predicated region
        $region65: #{tpu_custom_call.1} parent=63 // pred_check
          %p1526 = pneg %p1525
        $region66: #{tpu_custom_call.1} parent=63 // pred_check_branch
          %1528 = sbr.rel (%p1526) target = $region68
        $region67: #{tpu_custom_call.1} parent=63 // pred_region
          %v1529 = vld [vmem:[#allocation4] sm:$0xff]
          %v1530 = vld [vmem:[#allocation4 + $0x8] sm:$0xff]
          %v1531 = vld [vmem:[#allocation5] sm:$0xff]
          %v1532 = vld [vmem:[#allocation5 + $0x8] sm:$0xff]
          %vm1533 = vcmp.eq.s32.totalorder %v307, 2
          %v1534 = vsel %vm1533, %v821, 0.0
          %v1535 = vsel %vm1533, %v822, 0.0
          %v1536 = vsel %vm830, %v1534, 0.0
          %1537 = vadd.xlane.f32.xlu0 %v1536
          %v1538 = vpop.xlane.xlu0 %1537
          %v1539 = vsel %vm830, %v1535, 0.0
          %1540 = vadd.xlane.f32.xlu0 %v1539
          %v1541 = vpop.xlane.xlu0 %1540
          %vm1542 = vcmp.eq.s32.totalorder %v307, 3
          %v1543 = vsel %vm1542, %v821, 0.0
          %v1544 = vsel %vm1542, %v822, 0.0
          %v1545 = vsel %vm830, %v1543, 0.0
          %1546 = vadd.xlane.f32.xlu0 %v1545
          %v1547 = vpop.xlane.xlu0 %1546
          %v1548 = vsel %vm830, %v1544, 0.0
          %1549 = vadd.xlane.f32.xlu0 %v1548
          %v1550 = vpop.xlane.xlu0 %1549
          %v1551 = vmul.f32 %v1529, 0.0009765625
          %v1552 = vmul.f32 %v1530, 0.0009765625
          %v1553 = vmul.f32 %v1531, 0.0009765625
          %v1554 = vmul.f32 %v1532, 0.0009765625
          %v1555 = vmul.f32 %v1551, %v1551
          %v1556 = vmul.f32 %v1552, %v1552
          %v1557 = vsub.f32 %v1553, %v1555
          %v1558 = vsub.f32 %v1554, %v1556
          %v1559 = vadd.f32 %v1557, 1e-05
          %v1560 = vadd.f32 %v1558, 1e-05
          %v1561 = vrsqrt.pop %v1559
          %v1562 = vmul.f32 %v1561, %v1559
          %v1563 = vmul.f32 %v1562, %v1561
          %v1564 = vmul.f32 0.5, %v1563
          %v1565 = vsub.f32 1.5, %v1564
          %v1566 = vmul.f32 %v1561, %v1565
          %vm1567 = vweird.f32 %v1559
          %vm1568 = vweird.f32 %v1561
          %vm1569 = vmor %vm1567, %vm1568
          %v1570 = vsel %vm1569, %v1561, %v1566
          %v1571 = vrsqrt.pop %v1560
          %v1572 = vmul.f32 %v1571, %v1560
          %v1573 = vmul.f32 %v1572, %v1571
          %v1574 = vmul.f32 0.5, %v1573
          %v1575 = vsub.f32 1.5, %v1574
          %v1576 = vmul.f32 %v1571, %v1575
          %vm1577 = vweird.f32 %v1560
          %vm1578 = vweird.f32 %v1571
          %vm1579 = vmor %vm1577, %vm1578
          %v1580 = vsel %vm1579, %v1571, %v1576
          %v1581 = vmul.f32 %v1538, %v1570
          %v1582 = vmul.f32 %v1541, %v1580
          %v1583 = vmul.f32 %v1551, %v1581
          %v1584 = vmul.f32 %v1552, %v1582
          %v1585 = vsub.f32 %v1547, %v1583
          %v1586 = vsub.f32 %v1550, %v1584
          %v1587 = vld [vmem:[#allocation6] sm:$0xff]
          %v1588 = vld [vmem:[#allocation6 + $0x8] sm:$0xff]
          %v1589 = vld [vmem:[#allocation7] sm:$0xff]
          %v1590 = vld [vmem:[#allocation7 + $0x8] sm:$0xff]
          %vm1591 = vcmp.eq.s32.totalorder %v307, 4
          %v1592 = vsel %vm1591, %v821, 0.0
          %v1593 = vsel %vm1591, %v822, 0.0
          %v1594 = vsel %vm830, %v1592, 0.0
          %1595 = vadd.xlane.f32.xlu0 %v1594
          %v1596 = vpop.xlane.xlu0 %1595
          %v1597 = vsel %vm830, %v1593, 0.0
          %1598 = vadd.xlane.f32.xlu0 %v1597
          %v1599 = vpop.xlane.xlu0 %1598
          %vm1600 = vcmp.eq.s32.totalorder %v307, 5
          %v1601 = vsel %vm1600, %v821, 0.0
          %v1602 = vsel %vm1600, %v822, 0.0
          %v1603 = vsel %vm830, %v1601, 0.0
          %1604 = vadd.xlane.f32.xlu0 %v1603
          %v1605 = vpop.xlane.xlu0 %1604
          %v1606 = vsel %vm830, %v1602, 0.0
          %1607 = vadd.xlane.f32.xlu0 %v1606
          %v1608 = vpop.xlane.xlu0 %1607
          %v1609 = vmul.f32 %v1587, 0.0009765625
          %v1610 = vmul.f32 %v1588, 0.0009765625
          %v1611 = vmul.f32 %v1589, 0.0009765625
          %v1612 = vmul.f32 %v1590, 0.0009765625
          %v1613 = vmul.f32 %v1609, %v1609
          %v1614 = vmul.f32 %v1610, %v1610
          %v1615 = vsub.f32 %v1611, %v1613
          %v1616 = vsub.f32 %v1612, %v1614
          %v1617 = vadd.f32 %v1615, 1e-05
          %v1618 = vadd.f32 %v1616, 1e-05
          %v1619 = vrsqrt.pop %v1617
          %v1620 = vmul.f32 %v1619, %v1617
          %v1621 = vmul.f32 %v1620, %v1619
          %v1622 = vmul.f32 0.5, %v1621
          %v1623 = vsub.f32 1.5, %v1622
          %v1624 = vmul.f32 %v1619, %v1623
          %vm1625 = vweird.f32 %v1617
          %vm1626 = vweird.f32 %v1619
          %vm1627 = vmor %vm1625, %vm1626
          %v1628 = vsel %vm1627, %v1619, %v1624
          %v1629 = vrsqrt.pop %v1618
          %v1630 = vmul.f32 %v1629, %v1618
          %v1631 = vmul.f32 %v1630, %v1629
          %v1632 = vmul.f32 0.5, %v1631
          %v1633 = vsub.f32 1.5, %v1632
          %v1634 = vmul.f32 %v1629, %v1633
          %vm1635 = vweird.f32 %v1618
          %vm1636 = vweird.f32 %v1629
          %vm1637 = vmor %vm1635, %vm1636
          %v1638 = vsel %vm1637, %v1629, %v1634
          %v1639 = vmul.f32 %v1596, %v1628
          %v1640 = vmul.f32 %v1599, %v1638
          %v1641 = vmul.f32 %v1609, %v1639
          %v1642 = vmul.f32 %v1610, %v1640
          %v1643 = vsub.f32 %v1605, %v1641
          %v1644 = vsub.f32 %v1608, %v1642
          %v1645 = vsel %vm827, %v1160, 0.0
          %v1646 = vsel %vm827, %v1165, 0.0
          %v1647 = vsel %vm837, %v1178, %v1645
          %v1648 = vsel %vm837, %v1183, %v1646
          %1650 = vset.pattern.permute.xlu0 0
          %1651 = vperm.xlu0 %1650, %v1581
          %v1652 = vpop.permute.xlu0 %1651
          %1655 = vset.pattern.permute.xlu0 0
          %1656 = vperm.xlu0 %1655, %v1582
          %v1657 = vpop.permute.xlu0 %1656
          %v1659 = vsel %vm1533, %v1652, %v1647
          %v1660 = vsel %vm1533, %v1657, %v1648
          %1662 = vset.pattern.permute.xlu0 0
          %1663 = vperm.xlu0 %1662, %v1585
          %v1664 = vpop.permute.xlu0 %1663
          %1667 = vset.pattern.permute.xlu0 0
          %1668 = vperm.xlu0 %1667, %v1586
          %v1669 = vpop.permute.xlu0 %1668
          %v1671 = vsel %vm1542, %v1664, %v1659
          %v1672 = vsel %vm1542, %v1669, %v1660
          %1674 = vset.pattern.permute.xlu0 0
          %1675 = vperm.xlu0 %1674, %v1639
          %v1676 = vpop.permute.xlu0 %1675
          %1679 = vset.pattern.permute.xlu0 0
          %1680 = vperm.xlu0 %1679, %v1640
          %v1681 = vpop.permute.xlu0 %1680
          %v1683 = vsel %vm1591, %v1676, %v1671
          %v1684 = vsel %vm1591, %v1681, %v1672
          %1686 = vset.pattern.permute.xlu0 0
          %1687 = vperm.xlu0 %1686, %v1643
          %v1688 = vpop.permute.xlu0 %1687
          %1691 = vset.pattern.permute.xlu0 0
          %1692 = vperm.xlu0 %1691, %v1644
          %v1693 = vpop.permute.xlu0 %1692
          %v1695 = vsel %vm1600, %v1688, %v1683
          %v1696 = vsel %vm1600, %v1693, %v1684
          %1697 = vst.msk [vmem:[%s8] sm:$0xff] %vm830, %v1695
          %1698 = vst.msk [vmem:[%s8 + $0x8] sm:$0xff] %vm830, %v1696
        $region68: #{tpu_custom_call.1} parent=63 // pred_fallthru
          _
      $region64: #{tpu_custom_call.1} parent=51 // pred_fallthru
        _
      // Predicated region
      $region69: #{tpu_custom_call.1} parent=51 // pred_check
        %p1699 = pneg %p217
      $region70: #{tpu_custom_call.1} parent=51 // pred_check_branch
        %1701 = sbr.rel (%p1699) target = $region72
      $region71: #{tpu_custom_call.1} parent=51 // pred_region
        _
      $region72: #{tpu_custom_call.1} parent=51 // pred_fallthru
        _
      // Predicated region
      $region73: #{tpu_custom_call.1} parent=51 // pred_check
        %p1702 = pneg %p217
      $region74: #{tpu_custom_call.1} parent=51 // pred_check_branch
        %1704 = sbr.rel (%p1702) target = $region76
      $region75: #{tpu_custom_call.1} parent=51 // pred_region
        _
      $region76: #{tpu_custom_call.1} parent=51 // pred_fallthru
        _
    $region52: #{tpu_custom_call.1} parent=5 // pred_fallthru
      _
    %p1705 = scmp.le.s32.totalorder 2, %s14
    // Predicated region
    $region77: #{tpu_custom_call.1} parent=5 // pred_check
      %p1706 = pneg %p1705
    $region78: #{tpu_custom_call.1} parent=5 // pred_check_branch
      %1708 = sbr.rel (%p1706) target = $region80
    $region79: #{tpu_custom_call.1} parent=5 // pred_region
      %s1709 = ssub.s32 %s14, 2
    $region80: #{tpu_custom_call.1} parent=5 // pred_fallthru
      _
  $region6: #{tpu_custom_call.1} parent=0 // loop_footer
    %s18 = sadd.s32 1, %s14
  $region7: #{tpu_custom_call.1} parent=0 // loop_footer_branch
    %13 = sbr.rel target = $region3
  $region8: #{tpu_custom_call.1} parent=0 // loop_exit
    _

</llo_original>
